<compile_context>
chip_gen: v6e
topology: v6e:2x2x1
jax: 0.10.0
libtpu: 0.0.40
codegen_flags: <defaults>
</compile_context>

<pallas_src>
from functools import partial

import jax
import jax.numpy as jnp
from jax import lax
from jax.experimental import pallas as pl
from jax.experimental.pallas import tpu as pltpu

PAD = 128  # lane width: every padded feature dimension (K, F, H, L) -> 128


# ----------------------- fused conv(im2col) + GAP kernel --------------------

def _encoder_gap_kernel(p_ref, w_ref, b_ref, o_ref, acc_ref, *, inv_hw):
    """One grid step = one (image,batch) element `b` and one HW tile `s`.

    p_ref : (1, THW, KP)  bf16 im2col patches for element b, spatial tile s
    w_ref : (KP, 2*FP)    bf16 [online | target] conv weights
    b_ref : (1, 2*FP)     f32  [online | target] conv bias
    o_ref : (NB, 2*FP)    bf16 pooled features (resident across the grid)
    acc_ref: (NB, 2*FP)   f32  GAP accumulator (VMEM scratch)
    """
    b = pl.program_id(0)
    s = pl.program_id(1)

    @pl.when((b == 0) & (s == 0))
    def _():
        acc_ref[...] = jnp.zeros_like(acc_ref)

    x = p_ref[0]                                                   # (THW, KP)
    y = jnp.dot(x, w_ref[...], preferred_element_type=jnp.float32)  # MXU
    y = jnp.maximum(y + b_ref[...], 0.0)                           # bias+ReLU (f32 VPU)
    row_sum = jnp.sum(y, axis=0, keepdims=True)                    # partial GAP (1, 2FP)

    nb = acc_ref.shape[0]
    row_mask = lax.broadcasted_iota(jnp.int32, (nb, 1), 0) == b
    acc_ref[...] += jnp.where(row_mask, row_sum, 0.0)

    @pl.when((b == pl.num_programs(0) - 1) & (s == pl.num_programs(1) - 1))
    def _():
        o_ref[...] = (acc_ref[...] * inv_hw).astype(o_ref.dtype)


def encoder_both(patches, w_on, b_on, w_tg, b_tg):
    """patches: [NB, HW, KP] bf16 -> pooled features [NB, 2*PAD] bf16.

    Columns [:PAD] are the online-encoder features, [PAD:] the target's.
    """
    NB, HW, KP = patches.shape
    w = jnp.concatenate([w_on, w_tg], axis=1)            # (KP, 2*PAD) bf16
    bias = jnp.concatenate([b_on, b_tg], axis=1)         # (1, 2*PAD)  f32
    fout = w.shape[1]

    THW = HW if HW <= 512 else 512
    if HW % THW != 0:
        THW = HW
    assert HW % THW == 0 and THW % 8 == 0
    n_s = HW // THW

    return pl.pallas_call(
        partial(_encoder_gap_kernel, inv_hw=1.0 / HW),
        out_shape=jax.ShapeDtypeStruct((NB, fout), jnp.bfloat16),
        grid_spec=pltpu.PrefetchScalarGridSpec(
            num_scalar_prefetch=0,
            grid=(NB, n_s),
            in_specs=[
                pl.BlockSpec((1, THW, KP), lambda b, s: (b, s, 0)),
                pl.BlockSpec((KP, fout), lambda b, s: (0, 0)),
                pl.BlockSpec((1, fout), lambda b, s: (0, 0)),
            ],
            out_specs=pl.BlockSpec((NB, fout), lambda b, s: (0, 0)),
            scratch_shapes=[pltpu.VMEM((NB, fout), jnp.float32)],
        ),
        compiler_params=pltpu.CompilerParams(
            dimension_semantics=("arbitrary", "arbitrary"),
            vmem_limit_bytes=32 * 1024 * 1024,
        ),
    )(patches, w, bias)


# ------------------------- fused MLP-chain kernel ----------------------------

def _mlp_chain_kernel(*refs, n_layers, relu_flags):
    """refs = (x, w1, b1, ..., wN, bN, out). Intermediates stay in vregs."""
    x_ref = refs[0]
    o_ref = refs[-1]
    h = x_ref[...]                                         # bf16 [rows, d]
    for i in range(n_layers):
        w = refs[1 + 2 * i][...]                           # bf16
        b = refs[2 + 2 * i][...]                           # f32
        acc = jnp.dot(h, w, preferred_element_type=jnp.float32) + b
        if relu_flags[i]:
            acc = jnp.maximum(acc, 0.0)
        if i + 1 < n_layers:
            h = acc.astype(jnp.bfloat16)
        else:
            o_ref[...] = acc.astype(o_ref.dtype)


def mlp_chain(x, layers):
    """x: [rows, d_in] bf16 (lane-padded); layers: [(w_bf16, b_f32, relu), ...]."""
    rows = x.shape[0]
    d_out = layers[-1][0].shape[1]
    relu_flags = tuple(bool(r) for _, _, r in layers)
    args = [x]
    for w, b, _ in layers:
        args += [w, b]
    vmem = pl.BlockSpec(memory_space=pltpu.MemorySpace.VMEM)
    return pl.pallas_call(
        partial(_mlp_chain_kernel, n_layers=len(layers), relu_flags=relu_flags),
        out_shape=jax.ShapeDtypeStruct((rows, d_out), jnp.float32),
        in_specs=[vmem] * len(args),
        out_specs=vmem,
    )(*args)


# ------------------------------- glue (JAX) ---------------------------------

def build_patches(x1, x2, kp):
    """x1, x2: NCHW [B, C, H, W] -> shared im2col patches [2B, H*W, kp] bf16."""
    x = jnp.concatenate([x1, x2], axis=0)                  # [2B, C, H, W]
    b2, c, h, w = x.shape
    xp = jnp.pad(x, ((0, 0), (0, 0), (1, 1), (1, 1)))
    cols = [xp[:, :, dh:dh + h, dw:dw + w] for dh in range(3) for dw in range(3)]
    patches = jnp.stack(cols, axis=-1)                     # [2B, C, H, W, 9]
    patches = patches.transpose(0, 2, 3, 1, 4).reshape(b2, h * w, c * 9)
    patches = jnp.pad(patches, ((0, 0), (0, 0), (0, kp - c * 9)))
    return patches.astype(jnp.bfloat16)


# ------------------------------ params --------------------------------------

def init_params(key, in_ch, feature_dim, latent_dim, hidden_dim):
    ks = jax.random.split(key, 5)
    s = 0.05
    return {
        "enc_w": s * jax.random.normal(ks[0], (in_ch * 9, feature_dim), jnp.float32),
        "enc_b": jnp.zeros((feature_dim,), jnp.float32),
        "proj_w1": s * jax.random.normal(ks[1], (feature_dim, hidden_dim), jnp.float32),
        "proj_b1": jnp.zeros((hidden_dim,), jnp.float32),
        "proj_w2": s * jax.random.normal(ks[2], (hidden_dim, latent_dim), jnp.float32),
        "proj_b2": jnp.zeros((latent_dim,), jnp.float32),
        "pred_w1": s * jax.random.normal(ks[3], (latent_dim, hidden_dim), jnp.float32),
        "pred_b1": jnp.zeros((hidden_dim,), jnp.float32),
        "pred_w2": s * jax.random.normal(ks[4], (hidden_dim, latent_dim), jnp.float32),
        "pred_b2": jnp.zeros((latent_dim,), jnp.float32),
    }


def _pad2(a, r, c):
    return jnp.pad(a, ((0, r - a.shape[0]), (0, c - a.shape[1])))


def prepare_params(p):
    """Pad every dim to 128 lanes and cast weights to bf16 ONCE (hoisted)."""
    out = {"enc_w": _pad2(p["enc_w"], PAD, PAD).astype(jnp.bfloat16),
           "enc_b": _pad2(p["enc_b"].reshape(1, -1), 1, PAD)}
    for name in ("proj_w1", "proj_w2", "pred_w1", "pred_w2"):
        out[name] = _pad2(p[name], PAD, PAD).astype(jnp.bfloat16)
    for name in ("proj_b1", "proj_b2", "pred_b1", "pred_b2"):
        out[name] = _pad2(p[name].reshape(1, -1), 1, PAD)
    return out


# ------------------------------ BYOL forward --------------------------------

def byol_forward(online, target, x1, x2, latent_dim):
    B = x1.shape[0]
    patches = build_patches(x1, x2, PAD)                    # [2B, HW, 128] (shared)

    # One kernel: conv+ReLU+GAP for x1 & x2 through BOTH online & target encoders.
    enc_out = encoder_both(patches,
                           online["enc_w"], online["enc_b"],
                           target["enc_w"], target["enc_b"])  # [2B, 256] bf16
    y_on = enc_out[:, :PAD]                                  # online features (padded)
    y_tg = enc_out[:, PAD:]                                  # target features (padded)

    # Online branch: projector -> predictor fused into one kernel.
    p = mlp_chain(y_on, [
        (online["proj_w1"], online["proj_b1"], True),
        (online["proj_w2"], online["proj_b2"], False),
        (online["pred_w1"], online["pred_b1"], True),
        (online["pred_w2"], online["pred_b2"], False),
    ])                                                       # [2B, 128] f32

    # Target branch: projector only (no grad).
    z_t = mlp_chain(y_tg, [
        (target["proj_w1"], target["proj_b1"], True),
        (target["proj_w2"], target["proj_b2"], False),
    ])                                                       # [2B, 128] f32
    z_t = lax.stop_gradient(z_t)

    p1, p2 = p[:B, :latent_dim], p[B:, :latent_dim]
    z1_t, z2_t = z_t[:B, :latent_dim], z_t[B:, :latent_dim]
    return p1, p2, z1_t, z2_t


# --------------------------------- main --------------------------------------

if __name__ == "__main__":
    B, C, H, W = 2, 4, 16, 16
    feature_dim, latent_dim, hidden_dim = 32, 16, 64

    key = jax.random.PRNGKey(0)
    k_param, k_x1, k_x2 = jax.random.split(key, 3)

    raw_online = init_params(k_param, C, feature_dim, latent_dim, hidden_dim)
    # deepcopy at __init__ time -> target params identical to online params
    raw_target = jax.tree_util.tree_map(lambda a: a.copy(), raw_online)
    online = prepare_params(raw_online)
    target = prepare_params(raw_target)

    x1 = jax.random.normal(k_x1, (B, C, H, W), jnp.float32)
    x2 = jax.random.normal(k_x2, (B, C, H, W), jnp.float32)

    fwd = jax.jit(partial(byol_forward, latent_dim=latent_dim))
    p1, p2, z1_t, z2_t = fwd(online, target, x1, x2)
    jax.block_until_ready((p1, p2, z1_t, z2_t))

    assert p1.shape == (B, latent_dim)
    assert p2.shape == (B, latent_dim)
    assert z1_t.shape == (B, latent_dim)
    assert z2_t.shape == (B, latent_dim)

    print("KERNEL_OK")
</pallas_src>

<mosaic_0001>
module attributes {stable_mosaic.version = 11 : i64} {
  func.func @_encoder_gap_kernel(%arg0: i32, %arg1: i32, %arg2: memref<1x256x128xbf16, #tpu.memory_space<vmem>>, %arg3: memref<128x256xbf16, #tpu.memory_space<vmem>>, %arg4: memref<1x256xf32, #tpu.memory_space<vmem>>, %arg5: memref<4x256xbf16, #tpu.memory_space<vmem>>, %arg6: memref<4x256xf32, #tpu.memory_space<vmem>>) attributes {dimension_semantics = [#tpu.dimension_semantics<arbitrary>, #tpu.dimension_semantics<arbitrary>], iteration_bounds = array<i64: 4, 1>, scalar_prefetch = 0 : i64, scratch_operands = 1 : i64, tpu.core_type = #tpu.core_type<tc>, window_params = [{transform_indices = @transform_0, window_bounds = array<i64: 1, 256, 128>}, {pipeline_mode = #tpu.pipeline_mode<synchronous>, transform_indices = @transform_1, window_bounds = array<i64: 128, 256>}, {pipeline_mode = #tpu.pipeline_mode<synchronous>, transform_indices = @transform_2, window_bounds = array<i64: 1, 256>}, {pipeline_mode = #tpu.pipeline_mode<synchronous>, transform_indices = @transform_3, window_bounds = array<i64: 4, 256>}]} {
    %c0_i32 = arith.constant 0 : i32
    %0 = arith.cmpi eq, %arg0, %c0_i32 : i32
    %c0_i32_0 = arith.constant 0 : i32
    %1 = arith.cmpi eq, %arg1, %c0_i32_0 : i32
    %2 = arith.andi %0, %1 : i1
    %3 = arith.extui %2 : i1 to i32
    %c0_i32_1 = arith.constant 0 : i32
    %4 = arith.cmpi ne, %3, %c0_i32_1 : i32
    scf.if %4 {
      %cst_17 = arith.constant 0.000000e+00 : f32
      %33 = vector.broadcast %cst_17 : f32 to vector<4x256xf32>
      %c0_18 = arith.constant 0 : index
      %c0_19 = arith.constant 0 : index
      %34 = vector.load %arg6[%c0_18, %c0_19] : memref<4x256xf32, #tpu.memory_space<vmem>>, vector<4x256xf32>
      tpu.vector_store %arg6[%c0_18, %c0_19], %33 {strides = array<i32>} : memref<4x256xf32, #tpu.memory_space<vmem>>, vector<4x256xf32>,
    } else {
    }
    %c0 = arith.constant 0 : index
    %c0_2 = arith.constant 0 : index
    %c0_3 = arith.constant 0 : index
    %5 = vector.load %arg2[%c0, %c0_2, %c0_3] : memref<1x256x128xbf16, #tpu.memory_space<vmem>>, vector<1x256x128xbf16>
    %6 = vector.shape_cast %5 : vector<1x256x128xbf16> to vector<256x128xbf16>
    %c0_4 = arith.constant 0 : index
    %c0_5 = arith.constant 0 : index
    %7 = vector.load %arg3[%c0_4, %c0_5] : memref<128x256xbf16, #tpu.memory_space<vmem>>, vector<128x256xbf16>
    %cst = arith.constant dense<0.000000e+00> : vector<256x256xf32>
    %8 = tpu.matmul %6, %7, %cst {dimension_numbers = #tpu.dot_dimension_numbers<[1], [0], [0], [1], [0, 0, 1, 1], [], []>} : vector<256x128xbf16>, vector<128x256xbf16>, vector<256x256xf32> -> vector<256x256xf32>
    %c0_6 = arith.constant 0 : index
    %c0_7 = arith.constant 0 : index
    %9 = vector.load %arg4[%c0_6, %c0_7] : memref<1x256xf32, #tpu.memory_space<vmem>>, vector<1x256xf32>
    %10 = vector.broadcast %9 : vector<1x256xf32> to vector<256x256xf32>
    %11 = arith.addf %8, %10 : vector<256x256xf32>
    %cst_8 = arith.constant 0.000000e+00 : f32
    %12 = vector.broadcast %cst_8 : f32 to vector<256x256xf32>
    %13 = arith.maximumf %11, %12 : vector<256x256xf32>
    %cst_9 = arith.constant dense<0.000000e+00> : vector<256xf32>
    %14 = vector.multi_reduction <add>, %13, %cst_9 [0] : vector<256x256xf32> to vector<256xf32>
    %15 = vector.shape_cast %14 : vector<256xf32> to vector<1x256xf32>
    %16 = tpu.iota {dimensions = array<i32: 0>} : vector<4x1xi32>
    %17 = vector.broadcast %arg0 : i32 to vector<4x1xi32>
    %18 = arith.cmpi eq, %16, %17 : vector<4x1xi32>
    %c0_10 = arith.constant 0 : index
    %c0_11 = arith.constant 0 : index
    %19 = vector.load %arg6[%c0_10, %c0_11] : memref<4x256xf32, #tpu.memory_space<vmem>>, vector<4x256xf32>
    %cst_12 = arith.constant 0.000000e+00 : f32
    %20 = vector.shape_cast %18 : vector<4x1xi1> to vector<4x1xi1>
    %21 = vector.broadcast %20 : vector<4x1xi1> to vector<4x256xi1>
    %22 = vector.shape_cast %15 : vector<1x256xf32> to vector<1x256xf32>
    %23 = vector.broadcast %22 : vector<1x256xf32> to vector<4x256xf32>
    %24 = vector.broadcast %cst_12 : f32 to vector<4x256xf32>
    %25 = arith.select %21, %23, %24 : vector<4x256xi1>, vector<4x256xf32>
    %26 = arith.addf %19, %25 : vector<4x256xf32>
    %c0_13 = arith.constant 0 : index
    %c0_14 = arith.constant 0 : index
    %27 = vector.load %arg6[%c0_13, %c0_14] : memref<4x256xf32, #tpu.memory_space<vmem>>, vector<4x256xf32>
    tpu.vector_store %arg6[%c0_13, %c0_14], %26 {strides = array<i32>} : memref<4x256xf32, #tpu.memory_space<vmem>>, vector<4x256xf32>,
    %c3_i32 = arith.constant 3 : i32
    %28 = arith.cmpi eq, %arg0, %c3_i32 : i32
    %c0_i32_15 = arith.constant 0 : i32
    %29 = arith.cmpi eq, %arg1, %c0_i32_15 : i32
    %30 = arith.andi %28, %29 : i1
    %31 = arith.extui %30 : i1 to i32
    %c0_i32_16 = arith.constant 0 : i32
    %32 = arith.cmpi ne, %31, %c0_i32_16 : i32
    scf.if %32 {
      %c0_17 = arith.constant 0 : index
      %c0_18 = arith.constant 0 : index
      %33 = vector.load %arg6[%c0_17, %c0_18] : memref<4x256xf32, #tpu.memory_space<vmem>>, vector<4x256xf32>
      %cst_19 = arith.constant 3.906250e-03 : f32
      %34 = vector.broadcast %cst_19 : f32 to vector<4x256xf32>
      %35 = arith.mulf %33, %34 : vector<4x256xf32>
      %36 = arith.truncf %35 : vector<4x256xf32> to vector<4x256xbf16>
      %c0_20 = arith.constant 0 : index
      %c0_21 = arith.constant 0 : index
      %37 = vector.load %arg5[%c0_20, %c0_21] : memref<4x256xbf16, #tpu.memory_space<vmem>>, vector<4x256xbf16>
      tpu.vector_store %arg5[%c0_20, %c0_21], %36 {strides = array<i32>} : memref<4x256xbf16, #tpu.memory_space<vmem>>, vector<4x256xbf16>,
    } else {
    }
    return
  }
  func.func @transform_0(%arg0: i32, %arg1: i32) -> (i32, i32, i32) {
    %c0_i32 = arith.constant 0 : i32
    %c0_i32_0 = arith.constant 0 : i32
    return %arg0, %arg1, %c0_i32 : i32, i32, i32
  }
  func.func @transform_1(%arg0: i32, %arg1: i32) -> (i32, i32) {
    %c0_i32 = arith.constant 0 : i32
    %c0_i32_0 = arith.constant 0 : i32
    %c0_i32_1 = arith.constant 0 : i32
    return %c0_i32, %c0_i32_0 : i32, i32
  }
  func.func @transform_2(%arg0: i32, %arg1: i32) -> (i32, i32) {
    %c0_i32 = arith.constant 0 : i32
    %c0_i32_0 = arith.constant 0 : i32
    %c0_i32_1 = arith.constant 0 : i32
    return %c0_i32, %c0_i32_0 : i32, i32
  }
  func.func @transform_3(%arg0: i32, %arg1: i32) -> (i32, i32) {
    %c0_i32 = arith.constant 0 : i32
    %c0_i32_0 = arith.constant 0 : i32
    %c0_i32_1 = arith.constant 0 : i32
    return %c0_i32, %c0_i32_0 : i32, i32
  }
}

module attributes {stable_mosaic.version = 11 : i64} {
  func.func @_mlp_chain_kernel(%arg0: memref<4x128xbf16, #tpu.memory_space<vmem>>, %arg1: memref<128x128xbf16, #tpu.memory_space<vmem>>, %arg2: memref<1x128xf32, #tpu.memory_space<vmem>>, %arg3: memref<128x128xbf16, #tpu.memory_space<vmem>>, %arg4: memref<1x128xf32, #tpu.memory_space<vmem>>, %arg5: memref<128x128xbf16, #tpu.memory_space<vmem>>, %arg6: memref<1x128xf32, #tpu.memory_space<vmem>>, %arg7: memref<128x128xbf16, #tpu.memory_space<vmem>>, %arg8: memref<1x128xf32, #tpu.memory_space<vmem>>, %arg9: memref<4x128xf32, #tpu.memory_space<vmem>>) attributes {dimension_semantics = [], scalar_prefetch = 0 : i64, scratch_operands = 0 : i64, tpu.core_type = #tpu.core_type<tc>} {
    %c0 = arith.constant 0 : index
    %c0_0 = arith.constant 0 : index
    %0 = vector.load %arg0[%c0, %c0_0] : memref<4x128xbf16, #tpu.memory_space<vmem>>, vector<4x128xbf16>
    %c0_1 = arith.constant 0 : index
    %c0_2 = arith.constant 0 : index
    %1 = vector.load %arg1[%c0_1, %c0_2] : memref<128x128xbf16, #tpu.memory_space<vmem>>, vector<128x128xbf16>
    %c0_3 = arith.constant 0 : index
    %c0_4 = arith.constant 0 : index
    %2 = vector.load %arg2[%c0_3, %c0_4] : memref<1x128xf32, #tpu.memory_space<vmem>>, vector<1x128xf32>
    %cst = arith.constant dense<0.000000e+00> : vector<4x128xf32>
    %3 = tpu.matmul %0, %1, %cst {dimension_numbers = #tpu.dot_dimension_numbers<[1], [0], [0], [1], [0, 0, 1, 1], [], []>} : vector<4x128xbf16>, vector<128x128xbf16>, vector<4x128xf32> -> vector<4x128xf32>
    %4 = vector.broadcast %2 : vector<1x128xf32> to vector<4x128xf32>
    %5 = arith.addf %3, %4 : vector<4x128xf32>
    %cst_5 = arith.constant 0.000000e+00 : f32
    %6 = vector.broadcast %cst_5 : f32 to vector<4x128xf32>
    %7 = arith.maximumf %5, %6 : vector<4x128xf32>
    %8 = arith.truncf %7 : vector<4x128xf32> to vector<4x128xbf16>
    %c0_6 = arith.constant 0 : index
    %c0_7 = arith.constant 0 : index
    %9 = vector.load %arg3[%c0_6, %c0_7] : memref<128x128xbf16, #tpu.memory_space<vmem>>, vector<128x128xbf16>
    %c0_8 = arith.constant 0 : index
    %c0_9 = arith.constant 0 : index
    %10 = vector.load %arg4[%c0_8, %c0_9] : memref<1x128xf32, #tpu.memory_space<vmem>>, vector<1x128xf32>
    %cst_10 = arith.constant dense<0.000000e+00> : vector<4x128xf32>
    %11 = tpu.matmul %8, %9, %cst_10 {dimension_numbers = #tpu.dot_dimension_numbers<[1], [0], [0], [1], [0, 0, 1, 1], [], []>} : vector<4x128xbf16>, vector<128x128xbf16>, vector<4x128xf32> -> vector<4x128xf32>
    %12 = vector.broadcast %10 : vector<1x128xf32> to vector<4x128xf32>
    %13 = arith.addf %11, %12 : vector<4x128xf32>
    %14 = arith.truncf %13 : vector<4x128xf32> to vector<4x128xbf16>
    %c0_11 = arith.constant 0 : index
    %c0_12 = arith.constant 0 : index
    %15 = vector.load %arg5[%c0_11, %c0_12] : memref<128x128xbf16, #tpu.memory_space<vmem>>, vector<128x128xbf16>
    %c0_13 = arith.constant 0 : index
    %c0_14 = arith.constant 0 : index
    %16 = vector.load %arg6[%c0_13, %c0_14] : memref<1x128xf32, #tpu.memory_space<vmem>>, vector<1x128xf32>
    %cst_15 = arith.constant dense<0.000000e+00> : vector<4x128xf32>
    %17 = tpu.matmul %14, %15, %cst_15 {dimension_numbers = #tpu.dot_dimension_numbers<[1], [0], [0], [1], [0, 0, 1, 1], [], []>} : vector<4x128xbf16>, vector<128x128xbf16>, vector<4x128xf32> -> vector<4x128xf32>
    %18 = vector.broadcast %16 : vector<1x128xf32> to vector<4x128xf32>
    %19 = arith.addf %17, %18 : vector<4x128xf32>
    %cst_16 = arith.constant 0.000000e+00 : f32
    %20 = vector.broadcast %cst_16 : f32 to vector<4x128xf32>
    %21 = arith.maximumf %19, %20 : vector<4x128xf32>
    %22 = arith.truncf %21 : vector<4x128xf32> to vector<4x128xbf16>
    %c0_17 = arith.constant 0 : index
    %c0_18 = arith.constant 0 : index
    %23 = vector.load %arg7[%c0_17, %c0_18] : memref<128x128xbf16, #tpu.memory_space<vmem>>, vector<128x128xbf16>
    %c0_19 = arith.constant 0 : index
    %c0_20 = arith.constant 0 : index
    %24 = vector.load %arg8[%c0_19, %c0_20] : memref<1x128xf32, #tpu.memory_space<vmem>>, vector<1x128xf32>
    %cst_21 = arith.constant dense<0.000000e+00> : vector<4x128xf32>
    %25 = tpu.matmul %22, %23, %cst_21 {dimension_numbers = #tpu.dot_dimension_numbers<[1], [0], [0], [1], [0, 0, 1, 1], [], []>} : vector<4x128xbf16>, vector<128x128xbf16>, vector<4x128xf32> -> vector<4x128xf32>
    %26 = vector.broadcast %24 : vector<1x128xf32> to vector<4x128xf32>
    %27 = arith.addf %25, %26 : vector<4x128xf32>
    %c0_22 = arith.constant 0 : index
    %c0_23 = arith.constant 0 : index
    %28 = vector.load %arg9[%c0_22, %c0_23] : memref<4x128xf32, #tpu.memory_space<vmem>>, vector<4x128xf32>
    tpu.vector_store %arg9[%c0_22, %c0_23], %27 {strides = array<i32>} : memref<4x128xf32, #tpu.memory_space<vmem>>, vector<4x128xf32>,
    return
  }
}

module attributes {stable_mosaic.version = 11 : i64} {
  func.func @_mlp_chain_kernel(%arg0: memref<4x128xbf16, #tpu.memory_space<vmem>>, %arg1: memref<128x128xbf16, #tpu.memory_space<vmem>>, %arg2: memref<1x128xf32, #tpu.memory_space<vmem>>, %arg3: memref<128x128xbf16, #tpu.memory_space<vmem>>, %arg4: memref<1x128xf32, #tpu.memory_space<vmem>>, %arg5: memref<4x128xf32, #tpu.memory_space<vmem>>) attributes {dimension_semantics = [], scalar_prefetch = 0 : i64, scratch_operands = 0 : i64, tpu.core_type = #tpu.core_type<tc>} {
    %c0 = arith.constant 0 : index
    %c0_0 = arith.constant 0 : index
    %0 = vector.load %arg0[%c0, %c0_0] : memref<4x128xbf16, #tpu.memory_space<vmem>>, vector<4x128xbf16>
    %c0_1 = arith.constant 0 : index
    %c0_2 = arith.constant 0 : index
    %1 = vector.load %arg1[%c0_1, %c0_2] : memref<128x128xbf16, #tpu.memory_space<vmem>>, vector<128x128xbf16>
    %c0_3 = arith.constant 0 : index
    %c0_4 = arith.constant 0 : index
    %2 = vector.load %arg2[%c0_3, %c0_4] : memref<1x128xf32, #tpu.memory_space<vmem>>, vector<1x128xf32>
    %cst = arith.constant dense<0.000000e+00> : vector<4x128xf32>
    %3 = tpu.matmul %0, %1, %cst {dimension_numbers = #tpu.dot_dimension_numbers<[1], [0], [0], [1], [0, 0, 1, 1], [], []>} : vector<4x128xbf16>, vector<128x128xbf16>, vector<4x128xf32> -> vector<4x128xf32>
    %4 = vector.broadcast %2 : vector<1x128xf32> to vector<4x128xf32>
    %5 = arith.addf %3, %4 : vector<4x128xf32>
    %cst_5 = arith.constant 0.000000e+00 : f32
    %6 = vector.broadcast %cst_5 : f32 to vector<4x128xf32>
    %7 = arith.maximumf %5, %6 : vector<4x128xf32>
    %8 = arith.truncf %7 : vector<4x128xf32> to vector<4x128xbf16>
    %c0_6 = arith.constant 0 : index
    %c0_7 = arith.constant 0 : index
    %9 = vector.load %arg3[%c0_6, %c0_7] : memref<128x128xbf16, #tpu.memory_space<vmem>>, vector<128x128xbf16>
    %c0_8 = arith.constant 0 : index
    %c0_9 = arith.constant 0 : index
    %10 = vector.load %arg4[%c0_8, %c0_9] : memref<1x128xf32, #tpu.memory_space<vmem>>, vector<1x128xf32>
    %cst_10 = arith.constant dense<0.000000e+00> : vector<4x128xf32>
    %11 = tpu.matmul %8, %9, %cst_10 {dimension_numbers = #tpu.dot_dimension_numbers<[1], [0], [0], [1], [0, 0, 1, 1], [], []>} : vector<4x128xbf16>, vector<128x128xbf16>, vector<4x128xf32> -> vector<4x128xf32>
    %12 = vector.broadcast %10 : vector<1x128xf32> to vector<4x128xf32>
    %13 = arith.addf %11, %12 : vector<4x128xf32>
    %c0_11 = arith.constant 0 : index
    %c0_12 = arith.constant 0 : index
    %14 = vector.load %arg5[%c0_11, %c0_12] : memref<4x128xf32, #tpu.memory_space<vmem>>, vector<4x128xf32>
    tpu.vector_store %arg5[%c0_11, %c0_12], %13 {strides = array<i32>} : memref<4x128xf32, #tpu.memory_space<vmem>>, vector<4x128xf32>,
    return
  }
}

</mosaic_0001>

<llo_original>
// kernel: byol_forward.4
$region0: #{byol_forward.4}
  #allocation0 [shape = 'u32[]', space=smem, size = 0x4, offset = 0x4, fixed_abs, tag = 'smem constant byte address 0x4 - core index']
  #allocation1 [shape = 'u32[144,128]{1,0:T(1,128)}', space=vmem, size = 0x12000, scoped, tag = 'internal scratch']
  %s0 = inlined_call_operand.vmem [shape: bf16[4,128], index: 0, kind: input, shape index: {}]
  %s1 = inlined_call_operand.vmem [shape: bf16[128,128], index: 1, kind: input, shape index: {}]
  %s2 = inlined_call_operand.vmem [shape: f32[1,128], index: 2, kind: input, shape index: {}]
  %s3 = inlined_call_operand.vmem [shape: bf16[128,128], index: 3, kind: input, shape index: {}]
  %s4 = inlined_call_operand.vmem [shape: f32[1,128], index: 4, kind: input, shape index: {}]
  %s5 = inlined_call_operand.vmem [shape: bf16[128,128], index: 5, kind: input, shape index: {}]
  %s6 = inlined_call_operand.vmem [shape: f32[1,128], index: 6, kind: input, shape index: {}]
  %s7 = inlined_call_operand.vmem [shape: bf16[128,128], index: 7, kind: input, shape index: {}]
  %s8 = inlined_call_operand.vmem [shape: f32[1,128], index: 8, kind: input, shape index: {}]
  %s9 = inlined_call_operand.vmem [shape: f32[4,128], index: 9, kind: output, shape index: {}]
  %s10 = sld [smem:[#allocation0]]
  $region46: #{byol_forward.4} parent=0
    _
  %s12 = ssub.s32 1, %s10
  %s13 = scalar_select 0, %s12, %s10
  // Predicated region
  $region2: #{byol_forward.4} parent=0 // pred_check
    _
  $region3: #{byol_forward.4} parent=0 // pred_check_branch
    %15 = sbr.rel (0) target = $region5
  $region4: #{byol_forward.4} parent=0 // pred_region
    _
  $region5: #{byol_forward.4} parent=0 // pred_fallthru
    _
  // Predicated region
  $region6: #{byol_forward.4} parent=0 // pred_check
    _
  $region7: #{byol_forward.4} parent=0 // pred_check_branch
    %17 = sbr.rel (0) target = $region9
  $region8: #{byol_forward.4} parent=0 // pred_region
    _
  $region9: #{byol_forward.4} parent=0 // pred_fallthru
    _
  // Predicated region
  $region10: #{byol_forward.4} parent=0 // pred_check
    _
  $region11: #{byol_forward.4} parent=0 // pred_check_branch
    %19 = sbr.rel (0) target = $region13
  $region12: #{byol_forward.4} parent=0 // pred_region
    _
  $region13: #{byol_forward.4} parent=0 // pred_fallthru
    _
  // Predicated region
  $region14: #{byol_forward.4} parent=0 // pred_check
    _
  $region15: #{byol_forward.4} parent=0 // pred_check_branch
    %21 = sbr.rel (0) target = $region17
  $region16: #{byol_forward.4} parent=0 // pred_region
    _
  $region17: #{byol_forward.4} parent=0 // pred_fallthru
    _
  // Predicated region
  $region18: #{byol_forward.4} parent=0 // pred_check
    _
  $region19: #{byol_forward.4} parent=0 // pred_check_branch
    %23 = sbr.rel (0) target = $region21
  $region20: #{byol_forward.4} parent=0 // pred_region
    _
  $region21: #{byol_forward.4} parent=0 // pred_fallthru
    _
  // Predicated region
  $region22: #{byol_forward.4} parent=0 // pred_check
    _
  $region23: #{byol_forward.4} parent=0 // pred_check_branch
    %25 = sbr.rel (0) target = $region25
  $region24: #{byol_forward.4} parent=0 // pred_region
    _
  $region25: #{byol_forward.4} parent=0 // pred_fallthru
    _
  // Predicated region
  $region26: #{byol_forward.4} parent=0 // pred_check
    _
  $region27: #{byol_forward.4} parent=0 // pred_check_branch
    %27 = sbr.rel (0) target = $region29
  $region28: #{byol_forward.4} parent=0 // pred_region
    _
  $region29: #{byol_forward.4} parent=0 // pred_fallthru
    _
  // Predicated region
  $region30: #{byol_forward.4} parent=0 // pred_check
    _
  $region31: #{byol_forward.4} parent=0 // pred_check_branch
    %29 = sbr.rel (0) target = $region33
  $region32: #{byol_forward.4} parent=0 // pred_region
    _
  $region33: #{byol_forward.4} parent=0 // pred_fallthru
    _
  // Predicated region
  $region34: #{byol_forward.4} parent=0 // pred_check
    _
  $region35: #{byol_forward.4} parent=0 // pred_check_branch
    %31 = sbr.rel (0) target = $region37
  $region36: #{byol_forward.4} parent=0 // pred_region
    _
  $region37: #{byol_forward.4} parent=0 // pred_fallthru
    _
  %v33 = vld [vmem:[%s0] sm:$0x3]
  %v34 = vld [vmem:[%s1] sm:$0xf]
  %v35 = vld [vmem:[%s1 + $0x4] sm:$0xf]
  %v36 = vld [vmem:[%s1 + $0x8] sm:$0xf]
  %v37 = vld [vmem:[%s1 + $0xc] sm:$0xf]
  %v38 = vld [vmem:[%s1 + $0x10] sm:$0xf]
  %v39 = vld [vmem:[%s1 + $0x14] sm:$0xf]
  %v40 = vld [vmem:[%s1 + $0x18] sm:$0xf]
  %v41 = vld [vmem:[%s1 + $0x1c] sm:$0xf]
  %v42 = vld [vmem:[%s1 + $0x20] sm:$0xf]
  %v43 = vld [vmem:[%s1 + $0x24] sm:$0xf]
  %v44 = vld [vmem:[%s1 + $0x28] sm:$0xf]
  %v45 = vld [vmem:[%s1 + $0x2c] sm:$0xf]
  %v46 = vld [vmem:[%s1 + $0x30] sm:$0xf]
  %v47 = vld [vmem:[%s1 + $0x34] sm:$0xf]
  %v48 = vld [vmem:[%s1 + $0x38] sm:$0xf]
  %v49 = vld [vmem:[%s1 + $0x3c] sm:$0xf]
  %v50 = vld [vmem:[%s2] sm:$0x1]
  %v52 = vlaneseq
  %v53 = vshrl.u32 %v52, 7
  %v54 = vsub.s32 0, %v53
  %v55 = vrot.slane %v50, %v54
  %v73 = vunpack.c.l.b16 %v34
  %v74 = vunpack.c.l.b16 %v35
  %v75 = vunpack.c.l.b16 %v36
  %v76 = vunpack.c.l.b16 %v37
  %v77 = vunpack.c.l.b16 %v38
  %v78 = vunpack.c.l.b16 %v39
  %v79 = vunpack.c.l.b16 %v40
  %v80 = vunpack.c.l.b16 %v41
  %v81 = vunpack.c.l.b16 %v42
  %v82 = vunpack.c.l.b16 %v43
  %v83 = vunpack.c.l.b16 %v44
  %v84 = vunpack.c.l.b16 %v45
  %v85 = vunpack.c.l.b16 %v46
  %v86 = vunpack.c.l.b16 %v47
  %v87 = vunpack.c.l.b16 %v48
  %v88 = vunpack.c.l.b16 %v49
  %v89 = vpack.c.b16 %v74, %v73
  %v90 = vpack.c.b16 %v76, %v75
  %v91 = vpack.c.b16 %v78, %v77
  %v92 = vpack.c.b16 %v80, %v79
  %v93 = vpack.c.b16 %v82, %v81
  %v94 = vpack.c.b16 %v84, %v83
  %v95 = vpack.c.b16 %v86, %v85
  %v96 = vpack.c.b16 %v88, %v87
  %105 = vmatprep.subr.bf16.mxu0 0
  %106 = vmatpush1.bf16.msra.mxu0 %v96
  %107 = vmatprep.subr.bf16.mxu0 0
  %108 = vmatpush1.bf16.msra.mxu0 %v95
  %109 = vmatprep.subr.bf16.mxu0 0
  %110 = vmatpush1.bf16.msra.mxu0 %v94
  %111 = vmatprep.subr.bf16.mxu0 0
  %112 = vmatpush1.bf16.msra.mxu0 %v93
  %113 = vmatprep.subr.bf16.mxu0 0
  %114 = vmatpush1.bf16.msra.mxu0 %v92
  %115 = vmatprep.subr.bf16.mxu0 0
  %116 = vmatpush1.bf16.msra.mxu0 %v91
  %117 = vmatprep.subr.bf16.mxu0 0
  %118 = vmatpush1.bf16.msra.mxu0 %v90
  %119 = vmatprep.subr.bf16.mxu0 0
  %120 = vmatpush1.bf16.msra.mxu0 %v89
  %121 = vmatprep.subr.bf16.mxu0 0
  %122 = vmatpush2.bf16.msra.mxu0 0
  %123 = vmatprep.subr.bf16.mxu0 0
  %124 = vmatpush2.bf16.msra.mxu0 0
  %125 = vmatprep.subr.bf16.mxu0 0
  %126 = vmatpush2.bf16.msra.mxu0 0
  %127 = vmatprep.subr.bf16.mxu0 0
  %128 = vmatpush2.bf16.msra.mxu0 0
  %129 = vmatprep.subr.bf16.mxu0 0
  %130 = vmatpush2.bf16.msra.mxu0 0
  %131 = vmatprep.subr.bf16.mxu0 0
  %132 = vmatpush2.bf16.msra.mxu0 0
  %133 = vmatprep.subr.bf16.mxu0 0
  %134 = vmatpush2.bf16.msra.mxu0 0
  %135 = vmatprep.subr.bf16.mxu0 0
  %136 = vmatpush2.bf16.msra.mxu0 0
  %137 = vmatprep.mubr.bf16.mxu0 0
  %138 = vmatmul.mubr.bf16.gmra.mxu0 %v33
  %v139 = vpop.f32.mrf.mxu0
  %v140 = vadd.f32 %v55, %v139
  %v141 = vpop.f32.mrf.mxu0
  %v142 = vpop.f32.mrf.mxu0
  %v143 = vpop.f32.mrf.mxu0
  %144 = vdwg.mxu0
  %v145 = vmax.f32 %v140, 0.0
  %v146 = vpack.c.bf16 %v145, %v145
  %v147 = vld [vmem:[%s3] sm:$0xf]
  %v148 = vld [vmem:[%s3 + $0x4] sm:$0xf]
  %v149 = vld [vmem:[%s3 + $0x8] sm:$0xf]
  %v150 = vld [vmem:[%s3 + $0xc] sm:$0xf]
  %v151 = vld [vmem:[%s3 + $0x10] sm:$0xf]
  %v152 = vld [vmem:[%s3 + $0x14] sm:$0xf]
  %v153 = vld [vmem:[%s3 + $0x18] sm:$0xf]
  %v154 = vld [vmem:[%s3 + $0x1c] sm:$0xf]
  %v155 = vld [vmem:[%s3 + $0x20] sm:$0xf]
  %v156 = vld [vmem:[%s3 + $0x24] sm:$0xf]
  %v157 = vld [vmem:[%s3 + $0x28] sm:$0xf]
  %v158 = vld [vmem:[%s3 + $0x2c] sm:$0xf]
  %v159 = vld [vmem:[%s3 + $0x30] sm:$0xf]
  %v160 = vld [vmem:[%s3 + $0x34] sm:$0xf]
  %v161 = vld [vmem:[%s3 + $0x38] sm:$0xf]
  %v162 = vld [vmem:[%s3 + $0x3c] sm:$0xf]
  %v163 = vld [vmem:[%s4] sm:$0x1]
  %v165 = vlaneseq
  %v166 = vshrl.u32 %v165, 7
  %v167 = vsub.s32 0, %v166
  %v168 = vrot.slane %v163, %v167
  %v186 = vunpack.c.l.b16 %v147
  %v187 = vunpack.c.l.b16 %v148
  %v188 = vunpack.c.l.b16 %v149
  %v189 = vunpack.c.l.b16 %v150
  %v190 = vunpack.c.l.b16 %v151
  %v191 = vunpack.c.l.b16 %v152
  %v192 = vunpack.c.l.b16 %v153
  %v193 = vunpack.c.l.b16 %v154
  %v194 = vunpack.c.l.b16 %v155
  %v195 = vunpack.c.l.b16 %v156
  %v196 = vunpack.c.l.b16 %v157
  %v197 = vunpack.c.l.b16 %v158
  %v198 = vunpack.c.l.b16 %v159
  %v199 = vunpack.c.l.b16 %v160
  %v200 = vunpack.c.l.b16 %v161
  %v201 = vunpack.c.l.b16 %v162
  %v202 = vpack.c.b16 %v187, %v186
  %v203 = vpack.c.b16 %v189, %v188
  %v204 = vpack.c.b16 %v191, %v190
  %v205 = vpack.c.b16 %v193, %v192
  %v206 = vpack.c.b16 %v195, %v194
  %v207 = vpack.c.b16 %v197, %v196
  %v208 = vpack.c.b16 %v199, %v198
  %v209 = vpack.c.b16 %v201, %v200
  %218 = vmatprep.subr.bf16.mxu0 0
  %219 = vmatpush1.bf16.msra.mxu0 %v209
  %220 = vmatprep.subr.bf16.mxu0 0
  %221 = vmatpush1.bf16.msra.mxu0 %v208
  %222 = vmatprep.subr.bf16.mxu0 0
  %223 = vmatpush1.bf16.msra.mxu0 %v207
  %224 = vmatprep.subr.bf16.mxu0 0
  %225 = vmatpush1.bf16.msra.mxu0 %v206
  %226 = vmatprep.subr.bf16.mxu0 0
  %227 = vmatpush1.bf16.msra.mxu0 %v205
  %228 = vmatprep.subr.bf16.mxu0 0
  %229 = vmatpush1.bf16.msra.mxu0 %v204
  %230 = vmatprep.subr.bf16.mxu0 0
  %231 = vmatpush1.bf16.msra.mxu0 %v203
  %232 = vmatprep.subr.bf16.mxu0 0
  %233 = vmatpush1.bf16.msra.mxu0 %v202
  %234 = vmatprep.subr.bf16.mxu0 0
  %235 = vmatpush2.bf16.msra.mxu0 0
  %236 = vmatprep.subr.bf16.mxu0 0
  %237 = vmatpush2.bf16.msra.mxu0 0
  %238 = vmatprep.subr.bf16.mxu0 0
  %239 = vmatpush2.bf16.msra.mxu0 0
  %240 = vmatprep.subr.bf16.mxu0 0
  %241 = vmatpush2.bf16.msra.mxu0 0
  %242 = vmatprep.subr.bf16.mxu0 0
  %243 = vmatpush2.bf16.msra.mxu0 0
  %244 = vmatprep.subr.bf16.mxu0 0
  %245 = vmatpush2.bf16.msra.mxu0 0
  %246 = vmatprep.subr.bf16.mxu0 0
  %247 = vmatpush2.bf16.msra.mxu0 0
  %248 = vmatprep.subr.bf16.mxu0 0
  %249 = vmatpush2.bf16.msra.mxu0 0
  %250 = vmatprep.mubr.bf16.mxu0 0
  %251 = vmatmul.mubr.bf16.gmra.mxu0 %v146
  %v252 = vpop.f32.mrf.mxu0
  %v253 = vadd.f32 %v168, %v252
  %v254 = vpop.f32.mrf.mxu0
  %v255 = vpop.f32.mrf.mxu0
  %v256 = vpop.f32.mrf.mxu0
  %257 = vdwg.mxu0
  %v258 = vpack.c.bf16 %v253, %v253
  %v259 = vld [vmem:[%s5] sm:$0xf]
  %v260 = vld [vmem:[%s5 + $0x4] sm:$0xf]
  %v261 = vld [vmem:[%s5 + $0x8] sm:$0xf]
  %v262 = vld [vmem:[%s5 + $0xc] sm:$0xf]
  %v263 = vld [vmem:[%s5 + $0x10] sm:$0xf]
  %v264 = vld [vmem:[%s5 + $0x14] sm:$0xf]
  %v265 = vld [vmem:[%s5 + $0x18] sm:$0xf]
  %v266 = vld [vmem:[%s5 + $0x1c] sm:$0xf]
  %v267 = vld [vmem:[%s5 + $0x20] sm:$0xf]
  %v268 = vld [vmem:[%s5 + $0x24] sm:$0xf]
  %v269 = vld [vmem:[%s5 + $0x28] sm:$0xf]
  %v270 = vld [vmem:[%s5 + $0x2c] sm:$0xf]
  %v271 = vld [vmem:[%s5 + $0x30] sm:$0xf]
  %v272 = vld [vmem:[%s5 + $0x34] sm:$0xf]
  %v273 = vld [vmem:[%s5 + $0x38] sm:$0xf]
  %v274 = vld [vmem:[%s5 + $0x3c] sm:$0xf]
  %v275 = vld [vmem:[%s6] sm:$0x1]
  %v277 = vlaneseq
  %v278 = vshrl.u32 %v277, 7
  %v279 = vsub.s32 0, %v278
  %v280 = vrot.slane %v275, %v279
  %v298 = vunpack.c.l.b16 %v259
  %v299 = vunpack.c.l.b16 %v260
  %v300 = vunpack.c.l.b16 %v261
  %v301 = vunpack.c.l.b16 %v262
  %v302 = vunpack.c.l.b16 %v263
  %v303 = vunpack.c.l.b16 %v264
  %v304 = vunpack.c.l.b16 %v265
  %v305 = vunpack.c.l.b16 %v266
  %v306 = vunpack.c.l.b16 %v267
  %v307 = vunpack.c.l.b16 %v268
  %v308 = vunpack.c.l.b16 %v269
  %v309 = vunpack.c.l.b16 %v270
  %v310 = vunpack.c.l.b16 %v271
  %v311 = vunpack.c.l.b16 %v272
  %v312 = vunpack.c.l.b16 %v273
  %v313 = vunpack.c.l.b16 %v274
  %v314 = vpack.c.b16 %v299, %v298
  %v315 = vpack.c.b16 %v301, %v300
  %v316 = vpack.c.b16 %v303, %v302
  %v317 = vpack.c.b16 %v305, %v304
  %v318 = vpack.c.b16 %v307, %v306
  %v319 = vpack.c.b16 %v309, %v308
  %v320 = vpack.c.b16 %v311, %v310
  %v321 = vpack.c.b16 %v313, %v312
  %330 = vmatprep.subr.bf16.mxu0 0
  %331 = vmatpush1.bf16.msra.mxu0 %v321
  %332 = vmatprep.subr.bf16.mxu0 0
  %333 = vmatpush1.bf16.msra.mxu0 %v320
  %334 = vmatprep.subr.bf16.mxu0 0
  %335 = vmatpush1.bf16.msra.mxu0 %v319
  %336 = vmatprep.subr.bf16.mxu0 0
  %337 = vmatpush1.bf16.msra.mxu0 %v318
  %338 = vmatprep.subr.bf16.mxu0 0
  %339 = vmatpush1.bf16.msra.mxu0 %v317
  %340 = vmatprep.subr.bf16.mxu0 0
  %341 = vmatpush1.bf16.msra.mxu0 %v316
  %342 = vmatprep.subr.bf16.mxu0 0
  %343 = vmatpush1.bf16.msra.mxu0 %v315
  %344 = vmatprep.subr.bf16.mxu0 0
  %345 = vmatpush1.bf16.msra.mxu0 %v314
  %346 = vmatprep.subr.bf16.mxu0 0
  %347 = vmatpush2.bf16.msra.mxu0 0
  %348 = vmatprep.subr.bf16.mxu0 0
  %349 = vmatpush2.bf16.msra.mxu0 0
  %350 = vmatprep.subr.bf16.mxu0 0
  %351 = vmatpush2.bf16.msra.mxu0 0
  %352 = vmatprep.subr.bf16.mxu0 0
  %353 = vmatpush2.bf16.msra.mxu0 0
  %354 = vmatprep.subr.bf16.mxu0 0
  %355 = vmatpush2.bf16.msra.mxu0 0
  %356 = vmatprep.subr.bf16.mxu0 0
  %357 = vmatpush2.bf16.msra.mxu0 0
  %358 = vmatprep.subr.bf16.mxu0 0
  %359 = vmatpush2.bf16.msra.mxu0 0
  %360 = vmatprep.subr.bf16.mxu0 0
  %361 = vmatpush2.bf16.msra.mxu0 0
  %362 = vmatprep.mubr.bf16.mxu0 0
  %363 = vmatmul.mubr.bf16.gmra.mxu0 %v258
  %v364 = vpop.f32.mrf.mxu0
  %v365 = vadd.f32 %v280, %v364
  %v366 = vpop.f32.mrf.mxu0
  %v367 = vpop.f32.mrf.mxu0
  %v368 = vpop.f32.mrf.mxu0
  %369 = vdwg.mxu0
  %v370 = vmax.f32 %v365, 0.0
  %v371 = vpack.c.bf16 %v370, %v370
  %v372 = vld [vmem:[%s7] sm:$0xf]
  %v373 = vld [vmem:[%s7 + $0x4] sm:$0xf]
  %v374 = vld [vmem:[%s7 + $0x8] sm:$0xf]
  %v375 = vld [vmem:[%s7 + $0xc] sm:$0xf]
  %v376 = vld [vmem:[%s7 + $0x10] sm:$0xf]
  %v377 = vld [vmem:[%s7 + $0x14] sm:$0xf]
  %v378 = vld [vmem:[%s7 + $0x18] sm:$0xf]
  %v379 = vld [vmem:[%s7 + $0x1c] sm:$0xf]
  %v380 = vld [vmem:[%s7 + $0x20] sm:$0xf]
  %v381 = vld [vmem:[%s7 + $0x24] sm:$0xf]
  %v382 = vld [vmem:[%s7 + $0x28] sm:$0xf]
  %v383 = vld [vmem:[%s7 + $0x2c] sm:$0xf]
  %v384 = vld [vmem:[%s7 + $0x30] sm:$0xf]
  %v385 = vld [vmem:[%s7 + $0x34] sm:$0xf]
  %v386 = vld [vmem:[%s7 + $0x38] sm:$0xf]
  %v387 = vld [vmem:[%s7 + $0x3c] sm:$0xf]
  %v388 = vld [vmem:[%s8] sm:$0x1]
  %v390 = vlaneseq
  %v391 = vshrl.u32 %v390, 7
  %v392 = vsub.s32 0, %v391
  %v393 = vrot.slane %v388, %v392
  %v411 = vunpack.c.l.b16 %v372
  %v412 = vunpack.c.l.b16 %v373
  %v413 = vunpack.c.l.b16 %v374
  %v414 = vunpack.c.l.b16 %v375
  %v415 = vunpack.c.l.b16 %v376
  %v416 = vunpack.c.l.b16 %v377
  %v417 = vunpack.c.l.b16 %v378
  %v418 = vunpack.c.l.b16 %v379
  %v419 = vunpack.c.l.b16 %v380
  %v420 = vunpack.c.l.b16 %v381
  %v421 = vunpack.c.l.b16 %v382
  %v422 = vunpack.c.l.b16 %v383
  %v423 = vunpack.c.l.b16 %v384
  %v424 = vunpack.c.l.b16 %v385
  %v425 = vunpack.c.l.b16 %v386
  %v426 = vunpack.c.l.b16 %v387
  %v427 = vpack.c.b16 %v412, %v411
  %v428 = vpack.c.b16 %v414, %v413
  %v429 = vpack.c.b16 %v416, %v415
  %v430 = vpack.c.b16 %v418, %v417
  %v431 = vpack.c.b16 %v420, %v419
  %v432 = vpack.c.b16 %v422, %v421
  %v433 = vpack.c.b16 %v424, %v423
  %v434 = vpack.c.b16 %v426, %v425
  %443 = vmatprep.subr.bf16.mxu0 0
  %444 = vmatpush1.bf16.msra.mxu0 %v434
  %445 = vmatprep.subr.bf16.mxu0 0
  %446 = vmatpush1.bf16.msra.mxu0 %v433
  %447 = vmatprep.subr.bf16.mxu0 0
  %448 = vmatpush1.bf16.msra.mxu0 %v432
  %449 = vmatprep.subr.bf16.mxu0 0
  %450 = vmatpush1.bf16.msra.mxu0 %v431
  %451 = vmatprep.subr.bf16.mxu0 0
  %452 = vmatpush1.bf16.msra.mxu0 %v430
  %453 = vmatprep.subr.bf16.mxu0 0
  %454 = vmatpush1.bf16.msra.mxu0 %v429
  %455 = vmatprep.subr.bf16.mxu0 0
  %456 = vmatpush1.bf16.msra.mxu0 %v428
  %457 = vmatprep.subr.bf16.mxu0 0
  %458 = vmatpush1.bf16.msra.mxu0 %v427
  %459 = vmatprep.subr.bf16.mxu0 0
  %460 = vmatpush2.bf16.msra.mxu0 0
  %461 = vmatprep.subr.bf16.mxu0 0
  %462 = vmatpush2.bf16.msra.mxu0 0
  %463 = vmatprep.subr.bf16.mxu0 0
  %464 = vmatpush2.bf16.msra.mxu0 0
  %465 = vmatprep.subr.bf16.mxu0 0
  %466 = vmatpush2.bf16.msra.mxu0 0
  %467 = vmatprep.subr.bf16.mxu0 0
  %468 = vmatpush2.bf16.msra.mxu0 0
  %469 = vmatprep.subr.bf16.mxu0 0
  %470 = vmatpush2.bf16.msra.mxu0 0
  %471 = vmatprep.subr.bf16.mxu0 0
  %472 = vmatpush2.bf16.msra.mxu0 0
  %473 = vmatprep.subr.bf16.mxu0 0
  %474 = vmatpush2.bf16.msra.mxu0 0
  %475 = vmatprep.mubr.bf16.mxu0 0
  %476 = vmatmul.mubr.bf16.gmra.mxu0 %v371
  %v477 = vpop.f32.mrf.mxu0
  %v478 = vadd.f32 %v393, %v477
  %v479 = vpop.f32.mrf.mxu0
  %v480 = vpop.f32.mrf.mxu0
  %v481 = vpop.f32.mrf.mxu0
  %482 = vdwg.mxu0
  %483 = vst [vmem:[%s9] sm:$0xf] %v478
  // Predicated region
  $region38: #{byol_forward.4} parent=0 // pred_check
    _
  $region39: #{byol_forward.4} parent=0 // pred_check_branch
    %485 = sbr.rel (0) target = $region41
  $region40: #{byol_forward.4} parent=0 // pred_region
    _
  $region41: #{byol_forward.4} parent=0 // pred_fallthru
    _
  // Predicated region
  $region42: #{byol_forward.4} parent=0 // pred_check
    _
  $region43: #{byol_forward.4} parent=0 // pred_check_branch
    %487 = sbr.rel (0) target = $region45
  $region44: #{byol_forward.4} parent=0 // pred_region
    _
  $region45: #{byol_forward.4} parent=0 // pred_fallthru
    _

// kernel: byol_forward.5
$region0: #{byol_forward.5}
  #allocation0 [shape = 'u32[]', space=smem, size = 0x4, offset = 0x4, fixed_abs, tag = 'smem constant byte address 0x4 - core index']
  #allocation1 [shape = 'u32[144,128]{1,0:T(1,128)}', space=vmem, size = 0x12000, scoped, tag = 'internal scratch']
  %s0 = inlined_call_operand.vmem [shape: bf16[4,128], index: 0, kind: input, shape index: {}]
  %s1 = inlined_call_operand.vmem [shape: bf16[128,128], index: 1, kind: input, shape index: {}]
  %s2 = inlined_call_operand.vmem [shape: f32[1,128], index: 2, kind: input, shape index: {}]
  %s3 = inlined_call_operand.vmem [shape: bf16[128,128], index: 3, kind: input, shape index: {}]
  %s4 = inlined_call_operand.vmem [shape: f32[1,128], index: 4, kind: input, shape index: {}]
  %s5 = inlined_call_operand.vmem [shape: f32[4,128], index: 5, kind: output, shape index: {}]
  %s6 = sld [smem:[#allocation0]]
  $region30: #{byol_forward.5} parent=0
    _
  %s8 = ssub.s32 1, %s6
  %s9 = scalar_select 0, %s8, %s6
  // Predicated region
  $region2: #{byol_forward.5} parent=0 // pred_check
    _
  $region3: #{byol_forward.5} parent=0 // pred_check_branch
    %11 = sbr.rel (0) target = $region5
  $region4: #{byol_forward.5} parent=0 // pred_region
    _
  $region5: #{byol_forward.5} parent=0 // pred_fallthru
    _
  // Predicated region
  $region6: #{byol_forward.5} parent=0 // pred_check
    _
  $region7: #{byol_forward.5} parent=0 // pred_check_branch
    %13 = sbr.rel (0) target = $region9
  $region8: #{byol_forward.5} parent=0 // pred_region
    _
  $region9: #{byol_forward.5} parent=0 // pred_fallthru
    _
  // Predicated region
  $region10: #{byol_forward.5} parent=0 // pred_check
    _
  $region11: #{byol_forward.5} parent=0 // pred_check_branch
    %15 = sbr.rel (0) target = $region13
  $region12: #{byol_forward.5} parent=0 // pred_region
    _
  $region13: #{byol_forward.5} parent=0 // pred_fallthru
    _
  // Predicated region
  $region14: #{byol_forward.5} parent=0 // pred_check
    _
  $region15: #{byol_forward.5} parent=0 // pred_check_branch
    %17 = sbr.rel (0) target = $region17
  $region16: #{byol_forward.5} parent=0 // pred_region
    _
  $region17: #{byol_forward.5} parent=0 // pred_fallthru
    _
  // Predicated region
  $region18: #{byol_forward.5} parent=0 // pred_check
    _
  $region19: #{byol_forward.5} parent=0 // pred_check_branch
    %19 = sbr.rel (0) target = $region21
  $region20: #{byol_forward.5} parent=0 // pred_region
    _
  $region21: #{byol_forward.5} parent=0 // pred_fallthru
    _
  %v21 = vld [vmem:[%s0] sm:$0x3]
  %v22 = vld [vmem:[%s1] sm:$0xf]
  %v23 = vld [vmem:[%s1 + $0x4] sm:$0xf]
  %v24 = vld [vmem:[%s1 + $0x8] sm:$0xf]
  %v25 = vld [vmem:[%s1 + $0xc] sm:$0xf]
  %v26 = vld [vmem:[%s1 + $0x10] sm:$0xf]
  %v27 = vld [vmem:[%s1 + $0x14] sm:$0xf]
  %v28 = vld [vmem:[%s1 + $0x18] sm:$0xf]
  %v29 = vld [vmem:[%s1 + $0x1c] sm:$0xf]
  %v30 = vld [vmem:[%s1 + $0x20] sm:$0xf]
  %v31 = vld [vmem:[%s1 + $0x24] sm:$0xf]
  %v32 = vld [vmem:[%s1 + $0x28] sm:$0xf]
  %v33 = vld [vmem:[%s1 + $0x2c] sm:$0xf]
  %v34 = vld [vmem:[%s1 + $0x30] sm:$0xf]
  %v35 = vld [vmem:[%s1 + $0x34] sm:$0xf]
  %v36 = vld [vmem:[%s1 + $0x38] sm:$0xf]
  %v37 = vld [vmem:[%s1 + $0x3c] sm:$0xf]
  %v38 = vld [vmem:[%s2] sm:$0x1]
  %v40 = vlaneseq
  %v41 = vshrl.u32 %v40, 7
  %v42 = vsub.s32 0, %v41
  %v43 = vrot.slane %v38, %v42
  %v61 = vunpack.c.l.b16 %v22
  %v62 = vunpack.c.l.b16 %v23
  %v63 = vunpack.c.l.b16 %v24
  %v64 = vunpack.c.l.b16 %v25
  %v65 = vunpack.c.l.b16 %v26
  %v66 = vunpack.c.l.b16 %v27
  %v67 = vunpack.c.l.b16 %v28
  %v68 = vunpack.c.l.b16 %v29
  %v69 = vunpack.c.l.b16 %v30
  %v70 = vunpack.c.l.b16 %v31
  %v71 = vunpack.c.l.b16 %v32
  %v72 = vunpack.c.l.b16 %v33
  %v73 = vunpack.c.l.b16 %v34
  %v74 = vunpack.c.l.b16 %v35
  %v75 = vunpack.c.l.b16 %v36
  %v76 = vunpack.c.l.b16 %v37
  %v77 = vpack.c.b16 %v62, %v61
  %v78 = vpack.c.b16 %v64, %v63
  %v79 = vpack.c.b16 %v66, %v65
  %v80 = vpack.c.b16 %v68, %v67
  %v81 = vpack.c.b16 %v70, %v69
  %v82 = vpack.c.b16 %v72, %v71
  %v83 = vpack.c.b16 %v74, %v73
  %v84 = vpack.c.b16 %v76, %v75
  %93 = vmatprep.subr.bf16.mxu0 0
  %94 = vmatpush1.bf16.msra.mxu0 %v84
  %95 = vmatprep.subr.bf16.mxu0 0
  %96 = vmatpush1.bf16.msra.mxu0 %v83
  %97 = vmatprep.subr.bf16.mxu0 0
  %98 = vmatpush1.bf16.msra.mxu0 %v82
  %99 = vmatprep.subr.bf16.mxu0 0
  %100 = vmatpush1.bf16.msra.mxu0 %v81
  %101 = vmatprep.subr.bf16.mxu0 0
  %102 = vmatpush1.bf16.msra.mxu0 %v80
  %103 = vmatprep.subr.bf16.mxu0 0
  %104 = vmatpush1.bf16.msra.mxu0 %v79
  %105 = vmatprep.subr.bf16.mxu0 0
  %106 = vmatpush1.bf16.msra.mxu0 %v78
  %107 = vmatprep.subr.bf16.mxu0 0
  %108 = vmatpush1.bf16.msra.mxu0 %v77
  %109 = vmatprep.subr.bf16.mxu0 0
  %110 = vmatpush2.bf16.msra.mxu0 0
  %111 = vmatprep.subr.bf16.mxu0 0
  %112 = vmatpush2.bf16.msra.mxu0 0
  %113 = vmatprep.subr.bf16.mxu0 0
  %114 = vmatpush2.bf16.msra.mxu0 0
  %115 = vmatprep.subr.bf16.mxu0 0
  %116 = vmatpush2.bf16.msra.mxu0 0
  %117 = vmatprep.subr.bf16.mxu0 0
  %118 = vmatpush2.bf16.msra.mxu0 0
  %119 = vmatprep.subr.bf16.mxu0 0
  %120 = vmatpush2.bf16.msra.mxu0 0
  %121 = vmatprep.subr.bf16.mxu0 0
  %122 = vmatpush2.bf16.msra.mxu0 0
  %123 = vmatprep.subr.bf16.mxu0 0
  %124 = vmatpush2.bf16.msra.mxu0 0
  %125 = vmatprep.mubr.bf16.mxu0 0
  %126 = vmatmul.mubr.bf16.gmra.mxu0 %v21
  %v127 = vpop.f32.mrf.mxu0
  %v128 = vadd.f32 %v43, %v127
  %v129 = vpop.f32.mrf.mxu0
  %v130 = vpop.f32.mrf.mxu0
  %v131 = vpop.f32.mrf.mxu0
  %132 = vdwg.mxu0
  %v133 = vmax.f32 %v128, 0.0
  %v134 = vpack.c.bf16 %v133, %v133
  %v135 = vld [vmem:[%s3] sm:$0xf]
  %v136 = vld [vmem:[%s3 + $0x4] sm:$0xf]
  %v137 = vld [vmem:[%s3 + $0x8] sm:$0xf]
  %v138 = vld [vmem:[%s3 + $0xc] sm:$0xf]
  %v139 = vld [vmem:[%s3 + $0x10] sm:$0xf]
  %v140 = vld [vmem:[%s3 + $0x14] sm:$0xf]
  %v141 = vld [vmem:[%s3 + $0x18] sm:$0xf]
  %v142 = vld [vmem:[%s3 + $0x1c] sm:$0xf]
  %v143 = vld [vmem:[%s3 + $0x20] sm:$0xf]
  %v144 = vld [vmem:[%s3 + $0x24] sm:$0xf]
  %v145 = vld [vmem:[%s3 + $0x28] sm:$0xf]
  %v146 = vld [vmem:[%s3 + $0x2c] sm:$0xf]
  %v147 = vld [vmem:[%s3 + $0x30] sm:$0xf]
  %v148 = vld [vmem:[%s3 + $0x34] sm:$0xf]
  %v149 = vld [vmem:[%s3 + $0x38] sm:$0xf]
  %v150 = vld [vmem:[%s3 + $0x3c] sm:$0xf]
  %v151 = vld [vmem:[%s4] sm:$0x1]
  %v153 = vlaneseq
  %v154 = vshrl.u32 %v153, 7
  %v155 = vsub.s32 0, %v154
  %v156 = vrot.slane %v151, %v155
  %v174 = vunpack.c.l.b16 %v135
  %v175 = vunpack.c.l.b16 %v136
  %v176 = vunpack.c.l.b16 %v137
  %v177 = vunpack.c.l.b16 %v138
  %v178 = vunpack.c.l.b16 %v139
  %v179 = vunpack.c.l.b16 %v140
  %v180 = vunpack.c.l.b16 %v141
  %v181 = vunpack.c.l.b16 %v142
  %v182 = vunpack.c.l.b16 %v143
  %v183 = vunpack.c.l.b16 %v144
  %v184 = vunpack.c.l.b16 %v145
  %v185 = vunpack.c.l.b16 %v146
  %v186 = vunpack.c.l.b16 %v147
  %v187 = vunpack.c.l.b16 %v148
  %v188 = vunpack.c.l.b16 %v149
  %v189 = vunpack.c.l.b16 %v150
  %v190 = vpack.c.b16 %v175, %v174
  %v191 = vpack.c.b16 %v177, %v176
  %v192 = vpack.c.b16 %v179, %v178
  %v193 = vpack.c.b16 %v181, %v180
  %v194 = vpack.c.b16 %v183, %v182
  %v195 = vpack.c.b16 %v185, %v184
  %v196 = vpack.c.b16 %v187, %v186
  %v197 = vpack.c.b16 %v189, %v188
  %206 = vmatprep.subr.bf16.mxu0 0
  %207 = vmatpush1.bf16.msra.mxu0 %v197
  %208 = vmatprep.subr.bf16.mxu0 0
  %209 = vmatpush1.bf16.msra.mxu0 %v196
  %210 = vmatprep.subr.bf16.mxu0 0
  %211 = vmatpush1.bf16.msra.mxu0 %v195
  %212 = vmatprep.subr.bf16.mxu0 0
  %213 = vmatpush1.bf16.msra.mxu0 %v194
  %214 = vmatprep.subr.bf16.mxu0 0
  %215 = vmatpush1.bf16.msra.mxu0 %v193
  %216 = vmatprep.subr.bf16.mxu0 0
  %217 = vmatpush1.bf16.msra.mxu0 %v192
  %218 = vmatprep.subr.bf16.mxu0 0
  %219 = vmatpush1.bf16.msra.mxu0 %v191
  %220 = vmatprep.subr.bf16.mxu0 0
  %221 = vmatpush1.bf16.msra.mxu0 %v190
  %222 = vmatprep.subr.bf16.mxu0 0
  %223 = vmatpush2.bf16.msra.mxu0 0
  %224 = vmatprep.subr.bf16.mxu0 0
  %225 = vmatpush2.bf16.msra.mxu0 0
  %226 = vmatprep.subr.bf16.mxu0 0
  %227 = vmatpush2.bf16.msra.mxu0 0
  %228 = vmatprep.subr.bf16.mxu0 0
  %229 = vmatpush2.bf16.msra.mxu0 0
  %230 = vmatprep.subr.bf16.mxu0 0
  %231 = vmatpush2.bf16.msra.mxu0 0
  %232 = vmatprep.subr.bf16.mxu0 0
  %233 = vmatpush2.bf16.msra.mxu0 0
  %234 = vmatprep.subr.bf16.mxu0 0
  %235 = vmatpush2.bf16.msra.mxu0 0
  %236 = vmatprep.subr.bf16.mxu0 0
  %237 = vmatpush2.bf16.msra.mxu0 0
  %238 = vmatprep.mubr.bf16.mxu0 0
  %239 = vmatmul.mubr.bf16.gmra.mxu0 %v134
  %v240 = vpop.f32.mrf.mxu0
  %v241 = vadd.f32 %v156, %v240
  %v242 = vpop.f32.mrf.mxu0
  %v243 = vpop.f32.mrf.mxu0
  %v244 = vpop.f32.mrf.mxu0
  %245 = vdwg.mxu0
  %246 = vst [vmem:[%s5] sm:$0xf] %v241
  // Predicated region
  $region22: #{byol_forward.5} parent=0 // pred_check
    _
  $region23: #{byol_forward.5} parent=0 // pred_check_branch
    %248 = sbr.rel (0) target = $region25
  $region24: #{byol_forward.5} parent=0 // pred_region
    _
  $region25: #{byol_forward.5} parent=0 // pred_fallthru
    _
  // Predicated region
  $region26: #{byol_forward.5} parent=0 // pred_check
    _
  $region27: #{byol_forward.5} parent=0 // pred_check_branch
    %250 = sbr.rel (0) target = $region29
  $region28: #{byol_forward.5} parent=0 // pred_region
    _
  $region29: #{byol_forward.5} parent=0 // pred_fallthru
    _

// kernel: byol_forward.3
$region0: #{byol_forward.3}
  #allocation0 [shape = 'u32[]', space=smem, size = 0x4, offset = 0x4, fixed_abs, tag = 'smem constant byte address 0x4 - core index']
  #allocation1 [shape = 'u32[144,128]{1,0:T(1,128)}', space=vmem, size = 0x12000, scoped, tag = 'internal scratch']
  #allocation2 [shape = 'f32[4,256]{1,0:T(4,128)}', space=vmem, size = 0x1000, scoped, tag = 'scratch operand']
  %s0 = inlined_call_operand.vmem [shape: bf16[4,256,128], index: 0, kind: input, shape index: {}]
  %s1 = inlined_call_operand.vmem [shape: bf16[128,256], index: 1, kind: input, shape index: {}]
  %s2 = inlined_call_operand.vmem [shape: f32[1,256], index: 2, kind: input, shape index: {}]
  %s3 = inlined_call_operand.vmem [shape: bf16[4,256], index: 3, kind: output, shape index: {}]
  %s4 = sld [smem:[#allocation0]]
  $region53: #{byol_forward.3} parent=0
    _
  %s6 = ssub.s32 1, %s4
  %s7 = scalar_select 0, %s6, %s4
  loop: start=0, step=1, limit=6
  $region2: #{byol_forward.3} parent=0 // loop_pre_header
    _
  $region3: #{byol_forward.3} parent=0 // loop_header
    %s9 = sphi 0, %s13
    %p10 = scmp.ge.s32.totalorder %s9, 6
    %s16 = sphi 0, %s28
    %s17 = sphi 0, %s24
    %s18 = sphi 0, %s16
    %s19 = sphi 0, %s17
    %s20 = sphi 0, %s18
    %s21 = sphi 0, %s19
    %s33 = sphi 0, %s35
    %s36 = sphi 0, %s33
    %s37 = sphi 0, %s36
    %s53 = sphi 0, %s37
    %s57 = sphi 0, %s57
    %s59 = sphi 0, %s57
    %s60 = sphi 0, %s59
    %s74 = sphi 0, %s60
    %s78 = sphi 0, %s78
    %s80 = sphi 0, %s78
    %s81 = sphi 0, %s80
    %s95 = sphi 0, %s81
    %s99 = sphi 0, %s99
    %s101 = sphi 0, %s99
    %s102 = sphi 0, %s101
    %s116 = sphi 0, %s102
  $region4: #{byol_forward.3} parent=0 // loop_header_branch
    %12 = sbr.rel (%p10) target = $region8
  $region5: #{byol_forward.3} parent=0 // loop_body
    %s14 = ssub.s32 %s9, 1
    %s15 = ssub.s32 %s9, 2
    %s22 = sadd.s32 1, %s17
    %p23 = scmp.ge.s32.totalorder %s22, 1
    %s24 = scalar_select %p23, 0, %s22
    %s25 = sadd.s32 1, %s16
    %s26 = scalar_select %p23, %s25, %s16
    %p27 = scmp.ge.s32.totalorder %s26, 4
    %s28 = scalar_select %p27, 0, %s26
    %s29 = ssub.s32 %s16, %s28
    %s30 = ssub.s32 %s17, %s24
    %s31 = sor.u32 %s29, %s30
    %p32 = scmp.eq.s32.totalorder %s31, 0
    %s34 = sadd.s32 %s33, 1
    %s35 = scalar_select %p32, %s33, %s34
    %p38 = pneg %p32
    %p39 = scmp.eq.s32.totalorder %s9, 3
    %p40 = por %p38, %p39
    %p41 = scmp.ne.s32.totalorder %s33, %s36
    %p42 = scmp.eq.s32.totalorder %s9, 0
    %p43 = por %p41, %p42
    %p44 = scmp.ne.s32.totalorder %s33, %s36
    %p45 = scmp.eq.s32.totalorder %s14, 3
    %p46 = por %p44, %p45
    %p47 = scmp.ne.s32.totalorder %s36, %s37
    %p48 = scmp.eq.s32.totalorder %s14, 0
    %p49 = por %p47, %p48
    %p50 = scmp.ne.s32.totalorder %s36, %s37
    %p51 = scmp.eq.s32.totalorder %s15, 3
    %p52 = por %p50, %p51
    %p54 = scmp.ne.s32.totalorder %s37, %s53
    %p55 = scmp.eq.s32.totalorder %s15, 0
    %p56 = por %p54, %p55
    %s58 = sadd.s32 %s57, 1
    %p61 = scmp.eq.s32.totalorder %s9, 3
    %p62 = scmp.ne.s32.totalorder %s57, %s59
    %p63 = scmp.eq.s32.totalorder %s9, 0
    %p64 = por %p62, %p63
    %p65 = scmp.ne.s32.totalorder %s57, %s59
    %p66 = scmp.eq.s32.totalorder %s14, 3
    %p67 = por %p65, %p66
    %p68 = scmp.ne.s32.totalorder %s59, %s60
    %p69 = scmp.eq.s32.totalorder %s14, 0
    %p70 = por %p68, %p69
    %p71 = scmp.ne.s32.totalorder %s59, %s60
    %p72 = scmp.eq.s32.totalorder %s15, 3
    %p73 = por %p71, %p72
    %p75 = scmp.ne.s32.totalorder %s60, %s74
    %p76 = scmp.eq.s32.totalorder %s15, 0
    %p77 = por %p75, %p76
    %s79 = sadd.s32 %s78, 1
    %p82 = scmp.eq.s32.totalorder %s9, 3
    %p83 = scmp.ne.s32.totalorder %s78, %s80
    %p84 = scmp.eq.s32.totalorder %s9, 0
    %p85 = por %p83, %p84
    %p86 = scmp.ne.s32.totalorder %s78, %s80
    %p87 = scmp.eq.s32.totalorder %s14, 3
    %p88 = por %p86, %p87
    %p89 = scmp.ne.s32.totalorder %s80, %s81
    %p90 = scmp.eq.s32.totalorder %s14, 0
    %p91 = por %p89, %p90
    %p92 = scmp.ne.s32.totalorder %s80, %s81
    %p93 = scmp.eq.s32.totalorder %s15, 3
    %p94 = por %p92, %p93
    %p96 = scmp.ne.s32.totalorder %s81, %s95
    %p97 = scmp.eq.s32.totalorder %s15, 0
    %p98 = por %p96, %p97
    %s100 = sadd.s32 %s99, 1
    %p103 = scmp.eq.s32.totalorder %s9, 3
    %p104 = scmp.ne.s32.totalorder %s99, %s101
    %p105 = scmp.eq.s32.totalorder %s9, 0
    %p106 = por %p104, %p105
    %p107 = scmp.ne.s32.totalorder %s99, %s101
    %p108 = scmp.eq.s32.totalorder %s14, 3
    %p109 = por %p107, %p108
    %p110 = scmp.ne.s32.totalorder %s101, %s102
    %p111 = scmp.eq.s32.totalorder %s14, 0
    %p112 = por %p110, %p111
    %p113 = scmp.ne.s32.totalorder %s101, %s102
    %p114 = scmp.eq.s32.totalorder %s15, 3
    %p115 = por %p113, %p114
    %p117 = scmp.ne.s32.totalorder %s102, %s116
    %p118 = scmp.eq.s32.totalorder %s15, 0
    %p119 = por %p117, %p118
    %p120 = scmp.le.s32.totalorder 1, %s9
    %p121 = scmp.lt.s32.totalorder %s9, 5
    %p122 = pnand %p120, %p121
    %p123 = pneg %p122
    // Predicated region
    $region9: #{byol_forward.3} parent=5 // pred_check
      _
    $region10: #{byol_forward.3} parent=5 // pred_check_branch
      %125 = sbr.rel (%p122) target = $region12
    $region11: #{byol_forward.3} parent=5 // pred_region
      %s126 = ssub.s32 %s9, 1
      // Predicated region
      $region13: #{byol_forward.3} parent=11 // pred_check
        %p127 = pneg %p70
      $region14: #{byol_forward.3} parent=11 // pred_check_branch
        %129 = sbr.rel (%p127) target = $region16
      $region15: #{byol_forward.3} parent=11 // pred_region
        _
      $region16: #{byol_forward.3} parent=11 // pred_fallthru
        _
      // Predicated region
      $region17: #{byol_forward.3} parent=11 // pred_check
        %p130 = pneg %p91
      $region18: #{byol_forward.3} parent=11 // pred_check_branch
        %132 = sbr.rel (%p130) target = $region20
      $region19: #{byol_forward.3} parent=11 // pred_region
        _
      $region20: #{byol_forward.3} parent=11 // pred_fallthru
        _
    $region12: #{byol_forward.3} parent=5 // pred_fallthru
      _
    %p133 = scmp.lt.s32.totalorder %s9, 4
    // Predicated region
    $region21: #{byol_forward.3} parent=5 // pred_check
      %p134 = pneg %p133
    $region22: #{byol_forward.3} parent=5 // pred_check_branch
      %136 = sbr.rel (%p134) target = $region24
    $region23: #{byol_forward.3} parent=5 // pred_region
      // Predicated region
      $region25: #{byol_forward.3} parent=23 // pred_check
        %p137 = pneg %p43
      $region26: #{byol_forward.3} parent=23 // pred_check_branch
        %139 = sbr.rel (%p137) target = $region28
      $region27: #{byol_forward.3} parent=23 // pred_region
        %s140 = smul.u32 32, %s17
        %p141 = scmp.lt.s32.totalorder %s16, 3
        %s142 = scalar_select %p141, %s16, 3
        %p143 = scmp.lt.s32.totalorder %s140, 31
        %s144 = scalar_select %p143, %s140, 31
        %s145 = smul.addr %s142, 32
        %s146 = sadd.s32 %s144, %s145
        %s147 = smul.addr %s146, 4
        %s148 = scalar_lea.vmem %s0, %s147
        %s149 = smul.u32 32, %s17
      $region28: #{byol_forward.3} parent=23 // pred_fallthru
        _
    $region24: #{byol_forward.3} parent=5 // pred_fallthru
      _
    %p150 = scmp.le.s32.totalorder 1, %s9
    %p151 = scmp.lt.s32.totalorder %s9, 5
    %p152 = pnand %p150, %p151
    %p153 = pneg %p152
    // Predicated region
    $region29: #{byol_forward.3} parent=5 // pred_check
      _
    $region30: #{byol_forward.3} parent=5 // pred_check_branch
      %155 = sbr.rel (%p152) target = $region32
    $region31: #{byol_forward.3} parent=5 // pred_region
      %s156 = ssub.s32 %s9, 1
      %s157 = smul.u32 32, %s19
      %p158 = scmp.lt.s32.totalorder %s18, 3
      %s159 = scalar_select %p158, %s18, 3
      %p160 = scmp.lt.s32.totalorder %s157, 31
      %s161 = scalar_select %p160, %s157, 31
      %s162 = smul.addr %s159, 32
      %s163 = sadd.s32 %s161, %s162
      %s164 = smul.addr %s163, 4
      %s165 = scalar_lea.vmem %s0, %s164
      %p166 = pneg %p49
      %p167 = pneg %p46
      %p168 = pneg %p70
      %p169 = pneg %p67
      %p170 = pneg %p91
      %p171 = pneg %p88
      %p172 = pneg %p112
      %p173 = pneg %p109
      %s174 = smul.u32 32, %s19
      %p175 = scmp.lt.s32.totalorder %s18, 3
      %s176 = scalar_select %p175, %s18, 3
      %p177 = scmp.lt.s32.totalorder %s174, 31
      %s178 = scalar_select %p177, %s174, 31
      %s179 = smul.addr %s176, 32
      %s180 = sadd.s32 %s178, %s179
      %s181 = smul.addr %s180, 4
      %s182 = scalar_lea.vmem %s0, %s181
      %s183 = smul.u32 32, %s19
      %p185 = scmp.eq.s32.totalorder %s18, 0
      %p186 = scmp.eq.s32.totalorder %s19, 0
      %p187 = pnand %p185, %p186
      %p188 = pneg %p187
      // Predicated region
      $region33: #{byol_forward.3} parent=31 // pred_check
        _
      $region34: #{byol_forward.3} parent=31 // pred_check_branch
        %190 = sbr.rel (%p187) target = $region36
      $region35: #{byol_forward.3} parent=31 // pred_region
        %191 = vst [vmem:[#allocation2] sm:$0xff] 0.0
      $region36: #{byol_forward.3} parent=31 // pred_fallthru
        _
      %v192 = vld [vmem:[%s182] sm:$0xf]
      %v193 = vld [vmem:[%s182 + $0x4] sm:$0xf]
      %v194 = vld [vmem:[%s182 + $0x8] sm:$0xf]
      %v195 = vld [vmem:[%s182 + $0xc] sm:$0xf]
      %v196 = vld [vmem:[%s182 + $0x10] sm:$0xf]
      %v197 = vld [vmem:[%s182 + $0x14] sm:$0xf]
      %v198 = vld [vmem:[%s182 + $0x18] sm:$0xf]
      %v199 = vld [vmem:[%s182 + $0x1c] sm:$0xf]
      %v200 = vld [vmem:[%s182 + $0x20] sm:$0xf]
      %v201 = vld [vmem:[%s182 + $0x24] sm:$0xf]
      %v202 = vld [vmem:[%s182 + $0x28] sm:$0xf]
      %v203 = vld [vmem:[%s182 + $0x2c] sm:$0xf]
      %v204 = vld [vmem:[%s182 + $0x30] sm:$0xf]
      %v205 = vld [vmem:[%s182 + $0x34] sm:$0xf]
      %v206 = vld [vmem:[%s182 + $0x38] sm:$0xf]
      %v207 = vld [vmem:[%s182 + $0x3c] sm:$0xf]
      %v208 = vld [vmem:[%s182 + $0x40] sm:$0xf]
      %v209 = vld [vmem:[%s182 + $0x44] sm:$0xf]
      %v210 = vld [vmem:[%s182 + $0x48] sm:$0xf]
      %v211 = vld [vmem:[%s182 + $0x4c] sm:$0xf]
      %v212 = vld [vmem:[%s182 + $0x50] sm:$0xf]
      %v213 = vld [vmem:[%s182 + $0x54] sm:$0xf]
      %v214 = vld [vmem:[%s182 + $0x58] sm:$0xf]
      %v215 = vld [vmem:[%s182 + $0x5c] sm:$0xf]
      %v216 = vld [vmem:[%s182 + $0x60] sm:$0xf]
      %v217 = vld [vmem:[%s182 + $0x64] sm:$0xf]
      %v218 = vld [vmem:[%s182 + $0x68] sm:$0xf]
      %v219 = vld [vmem:[%s182 + $0x6c] sm:$0xf]
      %v220 = vld [vmem:[%s182 + $0x70] sm:$0xf]
      %v221 = vld [vmem:[%s182 + $0x74] sm:$0xf]
      %v222 = vld [vmem:[%s182 + $0x78] sm:$0xf]
      %v223 = vld [vmem:[%s182 + $0x7c] sm:$0xf]
      %v224 = vld [vmem:[%s1] sm:$0xff]
      %v225 = vld [vmem:[%s1 + $0x8] sm:$0xff]
      %v226 = vld [vmem:[%s1 + $0x10] sm:$0xff]
      %v227 = vld [vmem:[%s1 + $0x18] sm:$0xff]
      %v228 = vld [vmem:[%s1 + $0x20] sm:$0xff]
      %v229 = vld [vmem:[%s1 + $0x28] sm:$0xff]
      %v230 = vld [vmem:[%s1 + $0x30] sm:$0xff]
      %v231 = vld [vmem:[%s1 + $0x38] sm:$0xff]
      %v232 = vld [vmem:[%s1 + $0x40] sm:$0xff]
      %v233 = vld [vmem:[%s1 + $0x48] sm:$0xff]
      %v234 = vld [vmem:[%s1 + $0x50] sm:$0xff]
      %v235 = vld [vmem:[%s1 + $0x58] sm:$0xff]
      %v236 = vld [vmem:[%s1 + $0x60] sm:$0xff]
      %v237 = vld [vmem:[%s1 + $0x68] sm:$0xff]
      %v238 = vld [vmem:[%s1 + $0x70] sm:$0xff]
      %v239 = vld [vmem:[%s1 + $0x78] sm:$0xff]
      %v240 = vld [vmem:[%s2] sm:$0x3]
      %v242 = vlaneseq
      %v243 = vshrl.u32 %v242, 7
      %v244 = vsub.s32 0, %v243
      %v245 = vrot.slane %v240, %v244
      %v246 = vlaneseq
      %v247 = vshrl.u32 %v246, 7
      %v248 = vsub.s32 1, %v247
      %v249 = vrot.slane %v240, %v248
      %v284 = vunpack.c.l.b16 %v192
      %v285 = vunpack.c.l.b16 %v193
      %v286 = vunpack.c.l.b16 %v194
      %v287 = vunpack.c.l.b16 %v195
      %v288 = vunpack.c.l.b16 %v196
      %v289 = vunpack.c.l.b16 %v197
      %v290 = vunpack.c.l.b16 %v198
      %v291 = vunpack.c.l.b16 %v199
      %v292 = vunpack.c.l.b16 %v200
      %v293 = vunpack.c.l.b16 %v201
      %v294 = vunpack.c.l.b16 %v202
      %v295 = vunpack.c.l.b16 %v203
      %v296 = vunpack.c.l.b16 %v204
      %v297 = vunpack.c.l.b16 %v205
      %v298 = vunpack.c.l.b16 %v206
      %v299 = vunpack.c.l.b16 %v207
      %v300 = vunpack.c.l.b16 %v208
      %v301 = vunpack.c.l.b16 %v209
      %v302 = vunpack.c.l.b16 %v210
      %v303 = vunpack.c.l.b16 %v211
      %v304 = vunpack.c.l.b16 %v212
      %v305 = vunpack.c.l.b16 %v213
      %v306 = vunpack.c.l.b16 %v214
      %v307 = vunpack.c.l.b16 %v215
      %v308 = vunpack.c.l.b16 %v216
      %v309 = vunpack.c.l.b16 %v217
      %v310 = vunpack.c.l.b16 %v218
      %v311 = vunpack.c.l.b16 %v219
      %v312 = vunpack.c.l.b16 %v220
      %v313 = vunpack.c.l.b16 %v221
      %v314 = vunpack.c.l.b16 %v222
      %v315 = vunpack.c.l.b16 %v223
      %v316 = vpack.c.b16 %v285, %v284
      %v317 = vpack.c.b16 %v287, %v286
      %v318 = vpack.c.b16 %v289, %v288
      %v319 = vpack.c.b16 %v291, %v290
      %v320 = vpack.c.b16 %v293, %v292
      %v321 = vpack.c.b16 %v295, %v294
      %v322 = vpack.c.b16 %v297, %v296
      %v323 = vpack.c.b16 %v299, %v298
      %v324 = vpack.c.b16 %v301, %v300
      %v325 = vpack.c.b16 %v303, %v302
      %v326 = vpack.c.b16 %v305, %v304
      %v327 = vpack.c.b16 %v307, %v306
      %v328 = vpack.c.b16 %v309, %v308
      %v329 = vpack.c.b16 %v311, %v310
      %v330 = vpack.c.b16 %v313, %v312
      %v331 = vpack.c.b16 %v315, %v314
      %v364 = vunpack.c.l.b16 %v224
      %v365 = vunpack.c.h.b16 %v224
      %v366 = vunpack.c.l.b16 %v225
      %v367 = vunpack.c.h.b16 %v225
      %v368 = vunpack.c.l.b16 %v226
      %v369 = vunpack.c.h.b16 %v226
      %v370 = vunpack.c.l.b16 %v227
      %v371 = vunpack.c.h.b16 %v227
      %v372 = vunpack.c.l.b16 %v228
      %v373 = vunpack.c.h.b16 %v228
      %v374 = vunpack.c.l.b16 %v229
      %v375 = vunpack.c.h.b16 %v229
      %v376 = vunpack.c.l.b16 %v230
      %v377 = vunpack.c.h.b16 %v230
      %v378 = vunpack.c.l.b16 %v231
      %v379 = vunpack.c.h.b16 %v231
      %v380 = vunpack.c.l.b16 %v232
      %v381 = vunpack.c.h.b16 %v232
      %v382 = vunpack.c.l.b16 %v233
      %v383 = vunpack.c.h.b16 %v233
      %v384 = vunpack.c.l.b16 %v234
      %v385 = vunpack.c.h.b16 %v234
      %v386 = vunpack.c.l.b16 %v235
      %v387 = vunpack.c.h.b16 %v235
      %v388 = vunpack.c.l.b16 %v236
      %v389 = vunpack.c.h.b16 %v236
      %v390 = vunpack.c.l.b16 %v237
      %v391 = vunpack.c.h.b16 %v237
      %v392 = vunpack.c.l.b16 %v238
      %v393 = vunpack.c.h.b16 %v238
      %v394 = vunpack.c.l.b16 %v239
      %v395 = vunpack.c.h.b16 %v239
      %v396 = vpack.c.b16 %v366, %v364
      %v397 = vpack.c.b16 %v367, %v365
      %v398 = vpack.c.b16 %v370, %v368
      %v399 = vpack.c.b16 %v371, %v369
      %v400 = vpack.c.b16 %v374, %v372
      %v401 = vpack.c.b16 %v375, %v373
      %v402 = vpack.c.b16 %v378, %v376
      %v403 = vpack.c.b16 %v379, %v377
      %v404 = vpack.c.b16 %v382, %v380
      %v405 = vpack.c.b16 %v383, %v381
      %v406 = vpack.c.b16 %v386, %v384
      %v407 = vpack.c.b16 %v387, %v385
      %v408 = vpack.c.b16 %v390, %v388
      %v409 = vpack.c.b16 %v391, %v389
      %v410 = vpack.c.b16 %v394, %v392
      %v411 = vpack.c.b16 %v395, %v393
      %428 = vmatprep.subr.bf16.mxu0 %v411
      %429 = vmatpush1.bf16.msra.mxu0 %v410
      %430 = vmatprep.subr.bf16.mxu0 %v409
      %431 = vmatpush1.bf16.msra.mxu0 %v408
      %432 = vmatprep.subr.bf16.mxu0 %v407
      %433 = vmatpush1.bf16.msra.mxu0 %v406
      %434 = vmatprep.subr.bf16.mxu0 %v405
      %435 = vmatpush1.bf16.msra.mxu0 %v404
      %436 = vmatprep.subr.bf16.mxu0 %v403
      %437 = vmatpush1.bf16.msra.mxu0 %v402
      %438 = vmatprep.subr.bf16.mxu0 %v401
      %439 = vmatpush1.bf16.msra.mxu0 %v400
      %440 = vmatprep.subr.bf16.mxu0 %v399
      %441 = vmatpush1.bf16.msra.mxu0 %v398
      %442 = vmatprep.subr.bf16.mxu0 %v397
      %443 = vmatpush1.bf16.msra.mxu0 %v396
      %444 = vmatprep.subr.bf16.mxu0 0
      %445 = vmatpush2.bf16.msra.mxu0 0
      %446 = vmatprep.subr.bf16.mxu0 0
      %447 = vmatpush2.bf16.msra.mxu0 0
      %448 = vmatprep.subr.bf16.mxu0 0
      %449 = vmatpush2.bf16.msra.mxu0 0
      %450 = vmatprep.subr.bf16.mxu0 0
      %451 = vmatpush2.bf16.msra.mxu0 0
      %452 = vmatprep.subr.bf16.mxu0 0
      %453 = vmatpush2.bf16.msra.mxu0 0
      %454 = vmatprep.subr.bf16.mxu0 0
      %455 = vmatpush2.bf16.msra.mxu0 0
      %456 = vmatprep.subr.bf16.mxu0 0
      %457 = vmatpush2.bf16.msra.mxu0 0
      %458 = vmatprep.subr.bf16.mxu0 0
      %459 = vmatpush2.bf16.msra.mxu0 0
      %460 = vmatprep.mubr.bf16.mxu0 0
      %461 = vmatmul.mubr.bf16.gmra.mxu0 %v316
      %v462 = vpop.f32.mrf.mxu0
      %v463 = vadd.f32 %v245, %v462
      %v464 = vpop.f32.mrf.mxu0
      %v465 = vadd.f32 %v249, %v464
      %v466 = vpop.f32.mrf.mxu0
      %v467 = vadd.f32 %v245, %v466
      %v468 = vpop.f32.mrf.mxu0
      %v469 = vadd.f32 %v249, %v468
      %470 = vmatprep.mubr.bf16.mxu0 0
      %471 = vmatmul.mubr.bf16.gmra.mxu0 %v317
      %v472 = vpop.f32.mrf.mxu0
      %v473 = vadd.f32 %v245, %v472
      %v474 = vpop.f32.mrf.mxu0
      %v475 = vadd.f32 %v249, %v474
      %v476 = vpop.f32.mrf.mxu0
      %v477 = vadd.f32 %v245, %v476
      %v478 = vpop.f32.mrf.mxu0
      %v479 = vadd.f32 %v249, %v478
      %480 = vmatprep.mubr.bf16.mxu0 0
      %481 = vmatmul.mubr.bf16.gmra.mxu0 %v318
      %v482 = vpop.f32.mrf.mxu0
      %v483 = vadd.f32 %v245, %v482
      %v484 = vpop.f32.mrf.mxu0
      %v485 = vadd.f32 %v249, %v484
      %v486 = vpop.f32.mrf.mxu0
      %v487 = vadd.f32 %v245, %v486
      %v488 = vpop.f32.mrf.mxu0
      %v489 = vadd.f32 %v249, %v488
      %490 = vmatprep.mubr.bf16.mxu0 0
      %491 = vmatmul.mubr.bf16.gmra.mxu0 %v319
      %v492 = vpop.f32.mrf.mxu0
      %v493 = vadd.f32 %v245, %v492
      %v494 = vpop.f32.mrf.mxu0
      %v495 = vadd.f32 %v249, %v494
      %v496 = vpop.f32.mrf.mxu0
      %v497 = vadd.f32 %v245, %v496
      %v498 = vpop.f32.mrf.mxu0
      %v499 = vadd.f32 %v249, %v498
      %500 = vmatprep.mubr.bf16.mxu0 0
      %501 = vmatmul.mubr.bf16.gmra.mxu0 %v320
      %v502 = vpop.f32.mrf.mxu0
      %v503 = vadd.f32 %v245, %v502
      %v504 = vpop.f32.mrf.mxu0
      %v505 = vadd.f32 %v249, %v504
      %v506 = vpop.f32.mrf.mxu0
      %v507 = vadd.f32 %v245, %v506
      %v508 = vpop.f32.mrf.mxu0
      %v509 = vadd.f32 %v249, %v508
      %510 = vmatprep.mubr.bf16.mxu0 0
      %511 = vmatmul.mubr.bf16.gmra.mxu0 %v321
      %v512 = vpop.f32.mrf.mxu0
      %v513 = vadd.f32 %v245, %v512
      %v514 = vpop.f32.mrf.mxu0
      %v515 = vadd.f32 %v249, %v514
      %v516 = vpop.f32.mrf.mxu0
      %v517 = vadd.f32 %v245, %v516
      %v518 = vpop.f32.mrf.mxu0
      %v519 = vadd.f32 %v249, %v518
      %520 = vmatprep.mubr.bf16.mxu0 0
      %521 = vmatmul.mubr.bf16.gmra.mxu0 %v322
      %v522 = vpop.f32.mrf.mxu0
      %v523 = vadd.f32 %v245, %v522
      %v524 = vpop.f32.mrf.mxu0
      %v525 = vadd.f32 %v249, %v524
      %v526 = vpop.f32.mrf.mxu0
      %v527 = vadd.f32 %v245, %v526
      %v528 = vpop.f32.mrf.mxu0
      %v529 = vadd.f32 %v249, %v528
      %530 = vmatprep.mubr.bf16.mxu0 0
      %531 = vmatmul.mubr.bf16.gmra.mxu0 %v323
      %v532 = vpop.f32.mrf.mxu0
      %v533 = vadd.f32 %v245, %v532
      %v534 = vpop.f32.mrf.mxu0
      %v535 = vadd.f32 %v249, %v534
      %v536 = vpop.f32.mrf.mxu0
      %v537 = vadd.f32 %v245, %v536
      %v538 = vpop.f32.mrf.mxu0
      %v539 = vadd.f32 %v249, %v538
      %540 = vmatprep.mubr.bf16.mxu0 0
      %541 = vmatmul.mubr.bf16.gmra.mxu0 %v324
      %v542 = vpop.f32.mrf.mxu0
      %v543 = vadd.f32 %v245, %v542
      %v544 = vpop.f32.mrf.mxu0
      %v545 = vadd.f32 %v249, %v544
      %v546 = vpop.f32.mrf.mxu0
      %v547 = vadd.f32 %v245, %v546
      %v548 = vpop.f32.mrf.mxu0
      %v549 = vadd.f32 %v249, %v548
      %550 = vmatprep.mubr.bf16.mxu0 0
      %551 = vmatmul.mubr.bf16.gmra.mxu0 %v325
      %v552 = vpop.f32.mrf.mxu0
      %v553 = vadd.f32 %v245, %v552
      %v554 = vpop.f32.mrf.mxu0
      %v555 = vadd.f32 %v249, %v554
      %v556 = vpop.f32.mrf.mxu0
      %v557 = vadd.f32 %v245, %v556
      %v558 = vpop.f32.mrf.mxu0
      %v559 = vadd.f32 %v249, %v558
      %560 = vmatprep.mubr.bf16.mxu0 0
      %561 = vmatmul.mubr.bf16.gmra.mxu0 %v326
      %v562 = vpop.f32.mrf.mxu0
      %v563 = vadd.f32 %v245, %v562
      %v564 = vpop.f32.mrf.mxu0
      %v565 = vadd.f32 %v249, %v564
      %v566 = vpop.f32.mrf.mxu0
      %v567 = vadd.f32 %v245, %v566
      %v568 = vpop.f32.mrf.mxu0
      %v569 = vadd.f32 %v249, %v568
      %570 = vmatprep.mubr.bf16.mxu0 0
      %571 = vmatmul.mubr.bf16.gmra.mxu0 %v327
      %v572 = vpop.f32.mrf.mxu0
      %v573 = vadd.f32 %v245, %v572
      %v574 = vpop.f32.mrf.mxu0
      %v575 = vadd.f32 %v249, %v574
      %v576 = vpop.f32.mrf.mxu0
      %v577 = vadd.f32 %v245, %v576
      %v578 = vpop.f32.mrf.mxu0
      %v579 = vadd.f32 %v249, %v578
      %580 = vmatprep.mubr.bf16.mxu0 0
      %581 = vmatmul.mubr.bf16.gmra.mxu0 %v328
      %v582 = vpop.f32.mrf.mxu0
      %v583 = vadd.f32 %v245, %v582
      %v584 = vpop.f32.mrf.mxu0
      %v585 = vadd.f32 %v249, %v584
      %v586 = vpop.f32.mrf.mxu0
      %v587 = vadd.f32 %v245, %v586
      %v588 = vpop.f32.mrf.mxu0
      %v589 = vadd.f32 %v249, %v588
      %590 = vmatprep.mubr.bf16.mxu0 0
      %591 = vmatmul.mubr.bf16.gmra.mxu0 %v329
      %v592 = vpop.f32.mrf.mxu0
      %v593 = vadd.f32 %v245, %v592
      %v594 = vpop.f32.mrf.mxu0
      %v595 = vadd.f32 %v249, %v594
      %v596 = vpop.f32.mrf.mxu0
      %v597 = vadd.f32 %v245, %v596
      %v598 = vpop.f32.mrf.mxu0
      %v599 = vadd.f32 %v249, %v598
      %600 = vmatprep.mubr.bf16.mxu0 0
      %601 = vmatmul.mubr.bf16.gmra.mxu0 %v330
      %v602 = vpop.f32.mrf.mxu0
      %v603 = vadd.f32 %v245, %v602
      %v604 = vpop.f32.mrf.mxu0
      %v605 = vadd.f32 %v249, %v604
      %v606 = vpop.f32.mrf.mxu0
      %v607 = vadd.f32 %v245, %v606
      %v608 = vpop.f32.mrf.mxu0
      %v609 = vadd.f32 %v249, %v608
      %610 = vmatprep.mubr.bf16.mxu0 0
      %611 = vmatmul.mubr.bf16.gmra.mxu0 %v331
      %v612 = vpop.f32.mrf.mxu0
      %v613 = vadd.f32 %v245, %v612
      %v614 = vpop.f32.mrf.mxu0
      %v615 = vadd.f32 %v249, %v614
      %v616 = vpop.f32.mrf.mxu0
      %v617 = vadd.f32 %v245, %v616
      %v618 = vpop.f32.mrf.mxu0
      %v619 = vadd.f32 %v249, %v618
      %620 = vdwg.mxu0
      %v621 = vmax.f32 %v463, 0.0
      %v622 = vmax.f32 %v465, 0.0
      %v623 = vmax.f32 %v467, 0.0
      %v624 = vmax.f32 %v469, 0.0
      %v625 = vmax.f32 %v473, 0.0
      %v626 = vmax.f32 %v475, 0.0
      %v627 = vmax.f32 %v477, 0.0
      %v628 = vmax.f32 %v479, 0.0
      %v629 = vmax.f32 %v483, 0.0
      %v630 = vmax.f32 %v485, 0.0
      %v631 = vmax.f32 %v487, 0.0
      %v632 = vmax.f32 %v489, 0.0
      %v633 = vmax.f32 %v493, 0.0
      %v634 = vmax.f32 %v495, 0.0
      %v635 = vmax.f32 %v497, 0.0
      %v636 = vmax.f32 %v499, 0.0
      %v637 = vmax.f32 %v503, 0.0
      %v638 = vmax.f32 %v505, 0.0
      %v639 = vmax.f32 %v507, 0.0
      %v640 = vmax.f32 %v509, 0.0
      %v641 = vmax.f32 %v513, 0.0
      %v642 = vmax.f32 %v515, 0.0
      %v643 = vmax.f32 %v517, 0.0
      %v644 = vmax.f32 %v519, 0.0
      %v645 = vmax.f32 %v523, 0.0
      %v646 = vmax.f32 %v525, 0.0
      %v647 = vmax.f32 %v527, 0.0
      %v648 = vmax.f32 %v529, 0.0
      %v649 = vmax.f32 %v533, 0.0
      %v650 = vmax.f32 %v535, 0.0
      %v651 = vmax.f32 %v537, 0.0
      %v652 = vmax.f32 %v539, 0.0
      %v653 = vmax.f32 %v543, 0.0
      %v654 = vmax.f32 %v545, 0.0
      %v655 = vmax.f32 %v547, 0.0
      %v656 = vmax.f32 %v549, 0.0
      %v657 = vmax.f32 %v553, 0.0
      %v658 = vmax.f32 %v555, 0.0
      %v659 = vmax.f32 %v557, 0.0
      %v660 = vmax.f32 %v559, 0.0
      %v661 = vmax.f32 %v563, 0.0
      %v662 = vmax.f32 %v565, 0.0
      %v663 = vmax.f32 %v567, 0.0
      %v664 = vmax.f32 %v569, 0.0
      %v665 = vmax.f32 %v573, 0.0
      %v666 = vmax.f32 %v575, 0.0
      %v667 = vmax.f32 %v577, 0.0
      %v668 = vmax.f32 %v579, 0.0
      %v669 = vmax.f32 %v583, 0.0
      %v670 = vmax.f32 %v585, 0.0
      %v671 = vmax.f32 %v587, 0.0
      %v672 = vmax.f32 %v589, 0.0
      %v673 = vmax.f32 %v593, 0.0
      %v674 = vmax.f32 %v595, 0.0
      %v675 = vmax.f32 %v597, 0.0
      %v676 = vmax.f32 %v599, 0.0
      %v677 = vmax.f32 %v603, 0.0
      %v678 = vmax.f32 %v605, 0.0
      %v679 = vmax.f32 %v607, 0.0
      %v680 = vmax.f32 %v609, 0.0
      %v681 = vmax.f32 %v613, 0.0
      %v682 = vmax.f32 %v615, 0.0
      %v683 = vmax.f32 %v617, 0.0
      %v684 = vmax.f32 %v619, 0.0
      %v685 = vadd.f32 %v621, %v623
      %v686 = vadd.f32 %v685, %v625
      %v687 = vadd.f32 %v686, %v627
      %v688 = vadd.f32 %v687, %v629
      %v689 = vadd.f32 %v688, %v631
      %v690 = vadd.f32 %v689, %v633
      %v691 = vadd.f32 %v690, %v635
      %v692 = vadd.f32 %v691, %v637
      %v693 = vadd.f32 %v692, %v639
      %v694 = vadd.f32 %v693, %v641
      %v695 = vadd.f32 %v694, %v643
      %v696 = vadd.f32 %v695, %v645
      %v697 = vadd.f32 %v696, %v647
      %v698 = vadd.f32 %v697, %v649
      %v699 = vadd.f32 %v698, %v651
      %v700 = vadd.f32 %v699, %v653
      %v701 = vadd.f32 %v700, %v655
      %v702 = vadd.f32 %v701, %v657
      %v703 = vadd.f32 %v702, %v659
      %v704 = vadd.f32 %v703, %v661
      %v705 = vadd.f32 %v704, %v663
      %v706 = vadd.f32 %v705, %v665
      %v707 = vadd.f32 %v706, %v667
      %v708 = vadd.f32 %v707, %v669
      %v709 = vadd.f32 %v708, %v671
      %v710 = vadd.f32 %v709, %v673
      %v711 = vadd.f32 %v710, %v675
      %v712 = vadd.f32 %v711, %v677
      %v713 = vadd.f32 %v712, %v679
      %v714 = vadd.f32 %v713, %v681
      %v715 = vadd.f32 %v714, %v683
      %v716 = vrot.slane %v715, 4
      %v717 = vadd.f32 %v715, %v716
      %v718 = vrot.slane %v717, 2
      %v719 = vadd.f32 %v717, %v718
      %v720 = vrot.slane %v719, 1
      %v721 = vadd.f32 %v719, %v720
      %v722 = vadd.f32 %v622, %v624
      %v723 = vadd.f32 %v722, %v626
      %v724 = vadd.f32 %v723, %v628
      %v725 = vadd.f32 %v724, %v630
      %v726 = vadd.f32 %v725, %v632
      %v727 = vadd.f32 %v726, %v634
      %v728 = vadd.f32 %v727, %v636
      %v729 = vadd.f32 %v728, %v638
      %v730 = vadd.f32 %v729, %v640
      %v731 = vadd.f32 %v730, %v642
      %v732 = vadd.f32 %v731, %v644
      %v733 = vadd.f32 %v732, %v646
      %v734 = vadd.f32 %v733, %v648
      %v735 = vadd.f32 %v734, %v650
      %v736 = vadd.f32 %v735, %v652
      %v737 = vadd.f32 %v736, %v654
      %v738 = vadd.f32 %v737, %v656
      %v739 = vadd.f32 %v738, %v658
      %v740 = vadd.f32 %v739, %v660
      %v741 = vadd.f32 %v740, %v662
      %v742 = vadd.f32 %v741, %v664
      %v743 = vadd.f32 %v742, %v666
      %v744 = vadd.f32 %v743, %v668
      %v745 = vadd.f32 %v744, %v670
      %v746 = vadd.f32 %v745, %v672
      %v747 = vadd.f32 %v746, %v674
      %v748 = vadd.f32 %v747, %v676
      %v749 = vadd.f32 %v748, %v678
      %v750 = vadd.f32 %v749, %v680
      %v751 = vadd.f32 %v750, %v682
      %v752 = vadd.f32 %v751, %v684
      %v753 = vrot.slane %v752, 4
      %v754 = vadd.f32 %v752, %v753
      %v755 = vrot.slane %v754, 2
      %v756 = vadd.f32 %v754, %v755
      %v757 = vrot.slane %v756, 1
      %v758 = vadd.f32 %v756, %v757
      %v759 = vlaneseq
      %v760 = vshrl.u32 %v759, 7
      %v761 = vstv %s18
      %vm762 = vcmp.eq.s32.totalorder %v760, %v761
      %v763 = vld [vmem:[#allocation2] sm:$0xff]
      %v764 = vsel %vm762, 1, 0
      %vm765 = vcmp.eq.s32.totalorder %v764, 1
      %v766 = vsel %vm765, %v721, 0.0
      %v767 = vsel %vm765, %v758, 0.0
      %v770 = vcombine.low %v766, %v767
      %v772 = vadd.f32 %v763, %v770
      %773 = vst [vmem:[#allocation2] sm:$0xff] %v772
      %p774 = scmp.eq.s32.totalorder %s18, 3
      %p775 = pnand %p774, %p186
      %p776 = pneg %p775
      // Predicated region
      $region37: #{byol_forward.3} parent=31 // pred_check
        _
      $region38: #{byol_forward.3} parent=31 // pred_check_branch
        %778 = sbr.rel (%p775) target = $region40
      $region39: #{byol_forward.3} parent=31 // pred_region
        %v779 = vld [vmem:[#allocation2] sm:$0xff]
        %v780 = vmul.f32 %v779, 0.00390625
        %v782 = vcombine.high %v780, %v780
        %v784 = vpack.c.bf16 %v780, %v780
        %v785 = vpack.c.bf16 %v782, %v782
        %v788 = vcombine.low %v784, %v785
        %v790 = vunpack.c.l.s4 1983009808
        %v791 = vunpack.c.0.s8 %v790
        %v792 = vlaneseq
        %v793 = vshrl.u32 %v792, 7
        %v794 = vsub.s32 %v791, %v793
        %v795 = vrot.slane %v788, %v794
        %797 = vst [vmem:[%s3] sm:$0xf] %v795
      $region40: #{byol_forward.3} parent=31 // pred_fallthru
        _
      // Predicated region
      $region41: #{byol_forward.3} parent=31 // pred_check
        %p798 = pneg %p109
      $region42: #{byol_forward.3} parent=31 // pred_check_branch
        %800 = sbr.rel (%p798) target = $region44
      $region43: #{byol_forward.3} parent=31 // pred_region
        _
      $region44: #{byol_forward.3} parent=31 // pred_fallthru
        _
      // Predicated region
      $region45: #{byol_forward.3} parent=31 // pred_check
        %p801 = pneg %p109
      $region46: #{byol_forward.3} parent=31 // pred_check_branch
        %803 = sbr.rel (%p801) target = $region48
      $region47: #{byol_forward.3} parent=31 // pred_region
        _
      $region48: #{byol_forward.3} parent=31 // pred_fallthru
        _
    $region32: #{byol_forward.3} parent=5 // pred_fallthru
      _
    %p804 = scmp.le.s32.totalorder 2, %s9
    // Predicated region
    $region49: #{byol_forward.3} parent=5 // pred_check
      %p805 = pneg %p804
    $region50: #{byol_forward.3} parent=5 // pred_check_branch
      %807 = sbr.rel (%p805) target = $region52
    $region51: #{byol_forward.3} parent=5 // pred_region
      %s808 = ssub.s32 %s9, 2
    $region52: #{byol_forward.3} parent=5 // pred_fallthru
      _
  $region6: #{byol_forward.3} parent=0 // loop_footer
    %s13 = sadd.s32 1, %s9
  $region7: #{byol_forward.3} parent=0 // loop_footer_branch
    %8 = sbr.rel target = $region3
  $region8: #{byol_forward.3} parent=0 // loop_exit
    _

</llo_original>
